<compile_context>
chip_gen: v5e
topology: v5e:2x2
jax: 0.10.0
libtpu: 0.0.40
codegen_flags: <defaults>
</compile_context>

<pallas_src>
import functools

import jax
import jax.numpy as jnp
from jax.experimental import pallas as pl
from jax.experimental.pallas import tpu as pltpu


def _round_up(x, m):
    return ((x + m - 1) // m) * m


def _device_tuning():
    """(vmem_limit_bytes, stage1_row_tile_target) chosen per TPU generation."""
    try:
        info = pltpu.get_tpu_info()
        cap = getattr(info, "vmem_capacity_bytes", None)
    except Exception:
        cap = None
    if cap is None:
        cap = 64 * 1024 * 1024
    if cap >= 100 * 1024 * 1024:          # v5e / v6e: 128 MiB physical VMEM
        return 64 * 1024 * 1024, 1024
    return 32 * 1024 * 1024, 512          # v7x: 64 MiB physical VMEM


_VMEM_LIMIT, _TM_TARGET = _device_tuning()


# ---------------------------------------------------------------------------
# Stage 1 kernel: x -> [BN_w+ReLU -> 1x1_w] and [BN_a+ReLU -> 1x1_a -> BN_b+ReLU]
# One read of x per row-tile; both weights stay resident in VMEM.
# ---------------------------------------------------------------------------
def _stage1_kernel(x_ref, bnx_ref, bnb_ref, ww_ref, wa_ref, xs_ref, ab_ref):
    x = x_ref[...].astype(jnp.float32)                             # (TM, Cin)
    # BN + ReLU in f32 on the VPU, bf16 only for the MXU operands.
    act_w = jnp.maximum(x * bnx_ref[0:1, :] + bnx_ref[1:2, :], 0.0)
    act_a = jnp.maximum(x * bnx_ref[2:3, :] + bnx_ref[3:4, :], 0.0)
    xs = jnp.dot(act_w.astype(jnp.bfloat16), ww_ref[...],
                 preferred_element_type=jnp.float32)               # (TM, CP)
    xs_ref[...] = xs.astype(jnp.bfloat16)
    a = jnp.dot(act_a.astype(jnp.bfloat16), wa_ref[...],
                preferred_element_type=jnp.float32)                # (TM, CaP)
    ab_ref[...] = jnp.maximum(a * bnb_ref[0:1, :] + bnb_ref[1:2, :],
                              0.0).astype(jnp.bfloat16)


def _row_tile(m, target):
    # Fixed tile + cdiv grid (Pallas masks the ragged last block).  Keep the
    # sublane dim a multiple of 16 so bf16 output blocks meet the (16, 128)
    # minimum tile.
    if m <= target:
        return m
    return max(16, target - target % 16)


def stage1(x2d, kp):
    M, Cin = x2d.shape
    CP = kp['w_w_pad'].shape[1]
    CaP = kp['w_a_pad'].shape[1]
    TM = _row_tile(M, _TM_TARGET)
    return pl.pallas_call(
        _stage1_kernel,
        out_shape=(jax.ShapeDtypeStruct((M, CP), jnp.bfloat16),
                   jax.ShapeDtypeStruct((M, CaP), jnp.bfloat16)),
        grid_spec=pltpu.PrefetchScalarGridSpec(
            num_scalar_prefetch=0,
            grid=(pl.cdiv(M, TM),),
            in_specs=[
                pl.BlockSpec((TM, Cin), lambda i: (i, 0)),
                pl.BlockSpec((4, Cin), lambda i: (0, 0)),    # BN_w / BN_a
                pl.BlockSpec((2, CaP), lambda i: (0, 0)),    # BN_b (padded)
                pl.BlockSpec((Cin, CP), lambda i: (0, 0)),   # resident weight
                pl.BlockSpec((Cin, CaP), lambda i: (0, 0)),  # resident weight
            ],
            out_specs=[
                pl.BlockSpec((TM, CP), lambda i: (i, 0)),
                pl.BlockSpec((TM, CaP), lambda i: (i, 0)),
            ],
        ),
        compiler_params=pltpu.CompilerParams(
            dimension_semantics=("parallel",),
            vmem_limit_bytes=_VMEM_LIMIT),
    )(x2d, kp['bnx'], kp['bnb'], kp['w_w_pad'], kp['w_a_pad'])


# ---------------------------------------------------------------------------
# Stage 2 kernel (per image): in-kernel 1-px zero halo -> 3x3 grouped conv
# (width-im2col, K = 3*CaP, lane-aligned concat) -> BN_c + ReLU -> 1x1_c ->
# packed residual/dense output.  Accumulation stays in values (no scratch RMW).
# ---------------------------------------------------------------------------
def _stage2_kernel(ab_ref, xs_ref, bnc_ref, wb_ref, wc_ref, o_ref, pad_ref):
    Hp, Wp, CaP = pad_ref.shape
    H, W = Hp - 2, Wp - 2
    # Build the zero-padded activation in VMEM (replaces the wrapper jnp.pad
    # which cost a full HBM round trip of act_b).
    pad_ref[...] = jnp.zeros_like(pad_ref)
    pad_ref[1:1 + H, 1:1 + W, :] = ab_ref[0]
    a_pad = pad_ref[...]                                           # (Hp, Wp, CaP) bf16

    acc = None
    for dy in range(3):
        rows = a_pad[dy:dy + H, :, :]          # outer-dim slice: free
        # width-im2col: stack the 3 dx taps along channels -> K = 3*CaP.
        # CaP is a 128 multiple, so each chunk is lane-aligned.
        # TODO(synk): for W not a multiple of 8 the reshape below relayouts.
        win = jnp.concatenate([rows[:, dx:dx + W, :] for dx in range(3)],
                              axis=-1)                             # (H, W, 3*CaP)
        part = jnp.dot(win.reshape(H * W, 3 * CaP), wb_ref[dy],
                       preferred_element_type=jnp.float32)         # (H*W, Cb)
        acc = part if acc is None else acc + part

    act_c = jnp.maximum(acc * bnc_ref[0:1, :] + bnc_ref[1:2, :], 0.0)
    y = jnp.dot(act_c.astype(jnp.bfloat16), wc_ref[...],
                preferred_element_type=jnp.float32)                # (H*W, CP)
    # w_w / w_c column packing makes this a pure add:
    #   cols [0:c1]            -> xs1 + y1  (resid)
    #   cols [c1:c1+2inc]      -> xs2 + 0   (dense part 1)
    #   cols [c1+2inc:c1+3inc] -> 0   + y2  (dense part 2)
    o_ref[0] = xs_ref[0].astype(jnp.float32) + y.reshape(H, W, -1)


def stage2(ab4, xs4, kp):
    N, H, W, CaP = ab4.shape
    CP = xs4.shape[-1]
    Cb = kp['w_c_pad'].shape[0]
    Hp, Wp = H + 2, W + 2
    return pl.pallas_call(
        _stage2_kernel,
        out_shape=jax.ShapeDtypeStruct((N, H, W, CP), jnp.float32),
        grid_spec=pltpu.PrefetchScalarGridSpec(
            num_scalar_prefetch=0,
            grid=(N,),
            in_specs=[
                pl.BlockSpec((1, H, W, CaP), lambda n: (n, 0, 0, 0)),
                pl.BlockSpec((1, H, W, CP), lambda n: (n, 0, 0, 0)),
                pl.BlockSpec((2, Cb), lambda n: (0, 0)),
                pl.BlockSpec((3, 3 * CaP, Cb), lambda n: (0, 0, 0)),
                pl.BlockSpec((Cb, CP), lambda n: (0, 0)),
            ],
            out_specs=pl.BlockSpec((1, H, W, CP), lambda n: (n, 0, 0, 0)),
            scratch_shapes=[pltpu.VMEM((Hp, Wp, CaP), jnp.bfloat16)],
        ),
        compiler_params=pltpu.CompilerParams(
            dimension_semantics=("parallel",),
            vmem_limit_bytes=_VMEM_LIMIT),
    )(ab4, xs4, kp['bnc'], kp['w_b3'], kp['w_c_pad'])


# ---------------------------------------------------------------------------
# Parameters (deterministic, synthetic) + kernel-ready packing
# ---------------------------------------------------------------------------
def fold_bn(key, C, eps=1e-3):
    k1, k2, k3, k4 = jax.random.split(key, 4)
    gamma = jax.random.uniform(k1, (C,), minval=0.5, maxval=1.5)
    beta = jax.random.normal(k2, (C,)) * 0.1
    mean = jax.random.normal(k3, (C,)) * 0.1
    var = jax.random.uniform(k4, (C,), minval=0.5, maxval=1.5)
    scale = gamma / jnp.sqrt(var + eps)
    shift = beta - mean * scale
    return scale.astype(jnp.float32), shift.astype(jnp.float32)


def conv1x1_weight(key, cin, cout):
    return (jax.random.normal(key, (cin, cout)) / jnp.sqrt(cin)).astype(jnp.float32)


def grouped_conv3x3_weight(key, ca, cb, groups):
    assert ca % groups == 0 and cb % groups == 0
    cgin, cgout = ca // groups, cb // groups
    w = jnp.zeros((3, 3, ca, cb), jnp.float32)
    ks = jax.random.split(key, groups)
    for g in range(groups):
        wg = jax.random.normal(ks[g], (3, 3, cgin, cgout)) / jnp.sqrt(9 * cgin)
        w = w.at[:, :, g * cgin:(g + 1) * cgin, g * cgout:(g + 1) * cgout].set(
            wg.astype(jnp.float32))
    return w


def make_params(key, in_chs, num_1x1_a, num_3x3_b, num_1x1_c, inc, groups):
    ks = jax.random.split(key, 8)
    p = {}
    p['scale_w'], p['shift_w'] = fold_bn(ks[0], in_chs)
    p['w_w'] = conv1x1_weight(ks[1], in_chs, num_1x1_c + 2 * inc)
    p['scale_a'], p['shift_a'] = fold_bn(ks[2], in_chs)
    p['w_a'] = conv1x1_weight(ks[3], in_chs, num_1x1_a)
    p['scale_b'], p['shift_b'] = fold_bn(ks[4], num_1x1_a)
    p['w_b'] = grouped_conv3x3_weight(ks[5], num_1x1_a, num_3x3_b, groups)
    p['scale_c'], p['shift_c'] = fold_bn(ks[6], num_3x3_b)
    p['w_c'] = conv1x1_weight(ks[7], num_3x3_b, num_1x1_c + inc)
    return p


def prepare_params(p, num_1x1_c, inc):
    """Pack BN vectors, pre-layout weights (bf16), pad to 128-lane widths."""
    c1 = num_1x1_c
    Cin = p['w_w'].shape[0]
    Ca = p['w_a'].shape[1]
    Cb = p['w_b'].shape[3]
    ctot = c1 + 3 * inc
    CP = _round_up(ctot, 128)       # lane-dense packed output width
    CaP = _round_up(Ca, 128)        # lane-dense act_b width

    kp = {}
    kp['bnx'] = jnp.stack([p['scale_w'], p['shift_w'],
                           p['scale_a'], p['shift_a']]).astype(jnp.float32)
    kp['bnb'] = jnp.zeros((2, CaP), jnp.float32).at[:, :Ca].set(
        jnp.stack([p['scale_b'], p['shift_b']]))   # padded chans -> act_b = 0
    kp['bnc'] = jnp.stack([p['scale_c'], p['shift_c']]).astype(jnp.float32)

    ww_pad = jnp.zeros((Cin, CP), jnp.float32).at[:, :c1 + 2 * inc].set(p['w_w'])
    kp['w_w_pad'] = ww_pad.astype(jnp.bfloat16)

    wa_pad = jnp.zeros((Cin, CaP), jnp.float32).at[:, :Ca].set(p['w_a'])
    kp['w_a_pad'] = wa_pad.astype(jnp.bfloat16)

    # (3, 3, CaP, Cb) -> (3, 3*CaP, Cb): row index dx*CaP + c matches the
    # in-kernel width-im2col channel packing (padded input channels are zero).
    wb_pad = jnp.zeros((3, 3, CaP, Cb), jnp.float32).at[:, :, :Ca, :].set(p['w_b'])
    kp['w_b3'] = wb_pad.reshape(3, 3 * CaP, Cb).astype(jnp.bfloat16)

    wc_pad = jnp.zeros((Cb, CP), jnp.float32)
    wc_pad = wc_pad.at[:, :c1].set(p['w_c'][:, :c1])
    wc_pad = wc_pad.at[:, c1 + 2 * inc:ctot].set(p['w_c'][:, c1:])
    kp['w_c_pad'] = wc_pad.astype(jnp.bfloat16)
    return kp


# ---------------------------------------------------------------------------
# DualPathBlock forward ('proj', stride 1, b=False)
# ---------------------------------------------------------------------------
@functools.partial(jax.jit, static_argnums=(2, 3))
def dual_path_block(x_nchw, kp, num_1x1_c, inc):
    # bf16 cast fused into the (already required) NCHW->NHWC transpose: halves
    # the x HBM stream read by stage 1.
    x = jnp.transpose(x_nchw, (0, 2, 3, 1)).astype(jnp.bfloat16)
    N, H, W, Cin = x.shape
    M = N * H * W
    c1 = num_1x1_c
    ctot = c1 + 3 * inc
    CaP = kp['w_a_pad'].shape[1]
    CP = kp['w_w_pad'].shape[1]

    xs2d, ab2d = stage1(x.reshape(M, Cin), kp)      # (M, CP) bf16, (M, CaP) bf16
    xs4 = xs2d.reshape(N, H, W, CP)                 # metadata-only reshapes
    ab4 = ab2d.reshape(N, H, W, CaP)
    out = stage2(ab4, xs4, kp)                      # (N, H, W, CP) f32

    resid = jnp.transpose(out[..., :c1], (0, 3, 1, 2))
    dense = jnp.transpose(out[..., c1:ctot], (0, 3, 1, 2))
    return resid, dense


# ---------------------------------------------------------------------------
# Pure-JAX f32 reference (same math as the PyTorch module)
# ---------------------------------------------------------------------------
def ref_forward(x_nchw, p, num_1x1_c, inc):
    x = jnp.transpose(x_nchw, (0, 2, 3, 1)).astype(jnp.float32)
    N, H, W, Cin = x.shape
    bnrelu = lambda v, s, t: jnp.maximum(v * s + t, 0.0)

    x2d = x.reshape(-1, Cin)
    xs = bnrelu(x2d, p['scale_w'], p['shift_w']) @ p['w_w']
    a = (bnrelu(x2d, p['scale_a'], p['shift_a']) @ p['w_a']).reshape(N, H, W, -1)
    act = bnrelu(a, p['scale_b'].reshape(1, 1, 1, -1),
                 p['shift_b'].reshape(1, 1, 1, -1))
    actp = jnp.pad(act, ((0, 0), (1, 1), (1, 1), (0, 0)))
    Cb = p['w_b'].shape[3]
    bacc = jnp.zeros((N, H, W, Cb), jnp.float32)
    for dy in range(3):
        for dx in range(3):
            bacc = bacc + jnp.einsum('nhwc,cd->nhwd',
                                     actp[:, dy:dy + H, dx:dx + W, :],
                                     p['w_b'][dy, dx])
    y = bnrelu(bacc.reshape(-1, Cb), p['scale_c'], p['shift_c']) @ p['w_c']
    resid = xs[:, :num_1x1_c] + y[:, :num_1x1_c]
    dense = jnp.concatenate([xs[:, num_1x1_c:], y[:, num_1x1_c:]], axis=1)
    resid = resid.reshape(N, H, W, num_1x1_c).transpose(0, 3, 1, 2)
    dense = dense.reshape(N, H, W, -1).transpose(0, 3, 1, 2)
    return resid, dense


if __name__ == "__main__":
    # Small DPN-style config: block_type='proj', b=False
    in_chs, num_1x1_a, num_3x3_b, num_1x1_c, inc, groups = 64, 32, 32, 64, 16, 4
    N, H, W = 2, 8, 8

    key = jax.random.PRNGKey(0)
    kx, kparam = jax.random.split(key)
    x = jax.random.normal(kx, (N, in_chs, H, W), jnp.float32)   # NCHW like PyTorch
    p = make_params(kparam, in_chs, num_1x1_a, num_3x3_b, num_1x1_c, inc, groups)
    kp = prepare_params(p, num_1x1_c, inc)

    resid, dense = dual_path_block(x, kp, num_1x1_c, inc)
    jax.block_until_ready((resid, dense))

    r_ref, d_ref = ref_forward(x, p, num_1x1_c, inc)
    assert resid.shape == (N, num_1x1_c, H, W)
    assert dense.shape == (N, 3 * inc, H, W)
    # bf16 x / bf16 weights / bf16 xs intermediate (all f32 MXU accumulation)
    # vs. the pure-f32 reference -> ~1% error.
    assert jnp.allclose(resid, r_ref, rtol=3e-2, atol=3e-2)
    assert jnp.allclose(dense, d_ref, rtol=3e-2, atol=3e-2)

    print("KERNEL_OK")
</pallas_src>

<mosaic_0001>
module attributes {stable_mosaic.version = 11 : i64} {
  func.func @_stage2_kernel(%arg0: i32, %arg1: memref<1x8x8x128xbf16, #tpu.memory_space<vmem>>, %arg2: memref<1x8x8x128xbf16, #tpu.memory_space<vmem>>, %arg3: memref<2x32xf32, #tpu.memory_space<vmem>>, %arg4: memref<3x384x32xbf16, #tpu.memory_space<vmem>>, %arg5: memref<32x128xbf16, #tpu.memory_space<vmem>>, %arg6: memref<1x8x8x128xf32, #tpu.memory_space<vmem>>, %arg7: memref<10x10x128xbf16, #tpu.memory_space<vmem>>) attributes {dimension_semantics = [#tpu.dimension_semantics<parallel>], iteration_bounds = array<i64: 2>, scalar_prefetch = 0 : i64, scratch_operands = 1 : i64, tpu.core_type = #tpu.core_type<tc>, window_params = [{transform_indices = @transform_0, window_bounds = array<i64: 1, 8, 8, 128>}, {transform_indices = @transform_1, window_bounds = array<i64: 1, 8, 8, 128>}, {pipeline_mode = #tpu.pipeline_mode<synchronous>, transform_indices = @transform_2, window_bounds = array<i64: 2, 32>}, {pipeline_mode = #tpu.pipeline_mode<synchronous>, transform_indices = @transform_3, window_bounds = array<i64: 3, 384, 32>}, {pipeline_mode = #tpu.pipeline_mode<synchronous>, transform_indices = @transform_4, window_bounds = array<i64: 32, 128>}, {transform_indices = @transform_5, window_bounds = array<i64: 1, 8, 8, 128>}]} {
    %cst = arith.constant 0.000000e+00 : bf16
    %0 = vector.broadcast %cst : bf16 to vector<10x10x128xbf16>
    %c0 = arith.constant 0 : index
    %c0_0 = arith.constant 0 : index
    %c0_1 = arith.constant 0 : index
    %1 = vector.load %arg7[%c0, %c0_0, %c0_1] : memref<10x10x128xbf16, #tpu.memory_space<vmem>>, vector<10x10x128xbf16>
    tpu.vector_store %arg7[%c0, %c0_0, %c0_1], %0 {strides = array<i32>} : memref<10x10x128xbf16, #tpu.memory_space<vmem>>, vector<10x10x128xbf16>,
    %c0_2 = arith.constant 0 : index
    %c0_3 = arith.constant 0 : index
    %c0_4 = arith.constant 0 : index
    %c0_5 = arith.constant 0 : index
    %2 = vector.load %arg1[%c0_2, %c0_3, %c0_4, %c0_5] : memref<1x8x8x128xbf16, #tpu.memory_space<vmem>>, vector<1x8x8x128xbf16>
    %3 = vector.shape_cast %2 : vector<1x8x8x128xbf16> to vector<8x8x128xbf16>
    %c1 = arith.constant 1 : index
    %c1_6 = arith.constant 1 : index
    %c0_7 = arith.constant 0 : index
    %4 = vector.load %arg7[%c1, %c1_6, %c0_7] : memref<10x10x128xbf16, #tpu.memory_space<vmem>>, vector<8x8x128xbf16>
    tpu.vector_store %arg7[%c1, %c1_6, %c0_7], %3 {strides = array<i32>} : memref<10x10x128xbf16, #tpu.memory_space<vmem>>, vector<8x8x128xbf16>,
    %c0_8 = arith.constant 0 : index
    %c0_9 = arith.constant 0 : index
    %c0_10 = arith.constant 0 : index
    %5 = vector.load %arg7[%c0_8, %c0_9, %c0_10] : memref<10x10x128xbf16, #tpu.memory_space<vmem>>, vector<10x10x128xbf16>
    %6 = vector.extract_strided_slice %5 {offsets = [0, 0, 0], sizes = [8, 10, 128], strides = [1, 1, 1]} : vector<10x10x128xbf16> to vector<8x10x128xbf16>
    %7 = vector.extract_strided_slice %6 {offsets = [0, 0, 0], sizes = [8, 8, 128], strides = [1, 1, 1]} : vector<8x10x128xbf16> to vector<8x8x128xbf16>
    %8 = vector.extract_strided_slice %6 {offsets = [0, 1, 0], sizes = [8, 8, 128], strides = [1, 1, 1]} : vector<8x10x128xbf16> to vector<8x8x128xbf16>
    %9 = vector.extract_strided_slice %6 {offsets = [0, 2, 0], sizes = [8, 8, 128], strides = [1, 1, 1]} : vector<8x10x128xbf16> to vector<8x8x128xbf16>
    %10 = tpu.concatenate %7, %8, %9 in 2 : vector<8x8x128xbf16>, vector<8x8x128xbf16>, vector<8x8x128xbf16> -> vector<8x8x384xbf16>
    %11 = vector.shape_cast %10 : vector<8x8x384xbf16> to vector<64x384xbf16>
    %c0_11 = arith.constant 0 : index
    %c0_12 = arith.constant 0 : index
    %c0_13 = arith.constant 0 : index
    %12 = vector.load %arg4[%c0_11, %c0_12, %c0_13] : memref<3x384x32xbf16, #tpu.memory_space<vmem>>, vector<1x384x32xbf16>
    %13 = vector.shape_cast %12 : vector<1x384x32xbf16> to vector<384x32xbf16>
    %cst_14 = arith.constant dense<0.000000e+00> : vector<64x32xf32>
    %14 = tpu.matmul %11, %13, %cst_14 {dimension_numbers = #tpu.dot_dimension_numbers<[1], [0], [0], [1], [0, 0, 1, 1], [], []>} : vector<64x384xbf16>, vector<384x32xbf16>, vector<64x32xf32> -> vector<64x32xf32>
    %15 = vector.extract_strided_slice %5 {offsets = [1, 0, 0], sizes = [8, 10, 128], strides = [1, 1, 1]} : vector<10x10x128xbf16> to vector<8x10x128xbf16>
    %16 = vector.extract_strided_slice %15 {offsets = [0, 0, 0], sizes = [8, 8, 128], strides = [1, 1, 1]} : vector<8x10x128xbf16> to vector<8x8x128xbf16>
    %17 = vector.extract_strided_slice %15 {offsets = [0, 1, 0], sizes = [8, 8, 128], strides = [1, 1, 1]} : vector<8x10x128xbf16> to vector<8x8x128xbf16>
    %18 = vector.extract_strided_slice %15 {offsets = [0, 2, 0], sizes = [8, 8, 128], strides = [1, 1, 1]} : vector<8x10x128xbf16> to vector<8x8x128xbf16>
    %19 = tpu.concatenate %16, %17, %18 in 2 : vector<8x8x128xbf16>, vector<8x8x128xbf16>, vector<8x8x128xbf16> -> vector<8x8x384xbf16>
    %20 = vector.shape_cast %19 : vector<8x8x384xbf16> to vector<64x384xbf16>
    %c1_15 = arith.constant 1 : index
    %c0_16 = arith.constant 0 : index
    %c0_17 = arith.constant 0 : index
    %21 = vector.load %arg4[%c1_15, %c0_16, %c0_17] : memref<3x384x32xbf16, #tpu.memory_space<vmem>>, vector<1x384x32xbf16>
    %22 = vector.shape_cast %21 : vector<1x384x32xbf16> to vector<384x32xbf16>
    %cst_18 = arith.constant dense<0.000000e+00> : vector<64x32xf32>
    %23 = tpu.matmul %20, %22, %cst_18 {dimension_numbers = #tpu.dot_dimension_numbers<[1], [0], [0], [1], [0, 0, 1, 1], [], []>} : vector<64x384xbf16>, vector<384x32xbf16>, vector<64x32xf32> -> vector<64x32xf32>
    %24 = arith.addf %14, %23 : vector<64x32xf32>
    %25 = vector.extract_strided_slice %5 {offsets = [2, 0, 0], sizes = [8, 10, 128], strides = [1, 1, 1]} : vector<10x10x128xbf16> to vector<8x10x128xbf16>
    %26 = vector.extract_strided_slice %25 {offsets = [0, 0, 0], sizes = [8, 8, 128], strides = [1, 1, 1]} : vector<8x10x128xbf16> to vector<8x8x128xbf16>
    %27 = vector.extract_strided_slice %25 {offsets = [0, 1, 0], sizes = [8, 8, 128], strides = [1, 1, 1]} : vector<8x10x128xbf16> to vector<8x8x128xbf16>
    %28 = vector.extract_strided_slice %25 {offsets = [0, 2, 0], sizes = [8, 8, 128], strides = [1, 1, 1]} : vector<8x10x128xbf16> to vector<8x8x128xbf16>
    %29 = tpu.concatenate %26, %27, %28 in 2 : vector<8x8x128xbf16>, vector<8x8x128xbf16>, vector<8x8x128xbf16> -> vector<8x8x384xbf16>
    %30 = vector.shape_cast %29 : vector<8x8x384xbf16> to vector<64x384xbf16>
    %c2 = arith.constant 2 : index
    %c0_19 = arith.constant 0 : index
    %c0_20 = arith.constant 0 : index
    %31 = vector.load %arg4[%c2, %c0_19, %c0_20] : memref<3x384x32xbf16, #tpu.memory_space<vmem>>, vector<1x384x32xbf16>
    %32 = vector.shape_cast %31 : vector<1x384x32xbf16> to vector<384x32xbf16>
    %cst_21 = arith.constant dense<0.000000e+00> : vector<64x32xf32>
    %33 = tpu.matmul %30, %32, %cst_21 {dimension_numbers = #tpu.dot_dimension_numbers<[1], [0], [0], [1], [0, 0, 1, 1], [], []>} : vector<64x384xbf16>, vector<384x32xbf16>, vector<64x32xf32> -> vector<64x32xf32>
    %34 = arith.addf %24, %33 : vector<64x32xf32>
    %c0_22 = arith.constant 0 : index
    %c0_23 = arith.constant 0 : index
    %35 = vector.load %arg3[%c0_22, %c0_23] : memref<2x32xf32, #tpu.memory_space<vmem>>, vector<1x32xf32>
    %36 = vector.broadcast %35 : vector<1x32xf32> to vector<64x32xf32>
    %37 = arith.mulf %34, %36 : vector<64x32xf32>
    %c1_24 = arith.constant 1 : index
    %c0_25 = arith.constant 0 : index
    %38 = vector.load %arg3[%c1_24, %c0_25] : memref<2x32xf32, #tpu.memory_space<vmem>>, vector<1x32xf32>
    %39 = vector.broadcast %38 : vector<1x32xf32> to vector<64x32xf32>
    %40 = arith.addf %37, %39 : vector<64x32xf32>
    %cst_26 = arith.constant 0.000000e+00 : f32
    %41 = vector.broadcast %cst_26 : f32 to vector<64x32xf32>
    %42 = arith.maximumf %40, %41 : vector<64x32xf32>
    %43 = arith.truncf %42 : vector<64x32xf32> to vector<64x32xbf16>
    %c0_27 = arith.constant 0 : index
    %c0_28 = arith.constant 0 : index
    %44 = vector.load %arg5[%c0_27, %c0_28] : memref<32x128xbf16, #tpu.memory_space<vmem>>, vector<32x128xbf16>
    %cst_29 = arith.constant dense<0.000000e+00> : vector<64x128xf32>
    %45 = tpu.matmul %43, %44, %cst_29 {dimension_numbers = #tpu.dot_dimension_numbers<[1], [0], [0], [1], [0, 0, 1, 1], [], []>} : vector<64x32xbf16>, vector<32x128xbf16>, vector<64x128xf32> -> vector<64x128xf32>
    %c0_30 = arith.constant 0 : index
    %c0_31 = arith.constant 0 : index
    %c0_32 = arith.constant 0 : index
    %c0_33 = arith.constant 0 : index
    %46 = vector.load %arg2[%c0_30, %c0_31, %c0_32, %c0_33] : memref<1x8x8x128xbf16, #tpu.memory_space<vmem>>, vector<1x8x8x128xbf16>
    %47 = vector.shape_cast %46 : vector<1x8x8x128xbf16> to vector<8x8x128xbf16>
    %48 = arith.extf %47 : vector<8x8x128xbf16> to vector<8x8x128xf32>
    %49 = vector.shape_cast %45 : vector<64x128xf32> to vector<8x8x128xf32>
    %50 = arith.addf %48, %49 : vector<8x8x128xf32>
    %c0_34 = arith.constant 0 : index
    %c0_35 = arith.constant 0 : index
    %c0_36 = arith.constant 0 : index
    %c0_37 = arith.constant 0 : index
    %51 = vector.load %arg6[%c0_34, %c0_35, %c0_36, %c0_37] : memref<1x8x8x128xf32, #tpu.memory_space<vmem>>, vector<1x8x8x128xf32>
    %52 = vector.shape_cast %51 : vector<1x8x8x128xf32> to vector<8x8x128xf32>
    %53 = vector.shape_cast %50 : vector<8x8x128xf32> to vector<1x8x8x128xf32>
    tpu.vector_store %arg6[%c0_34, %c0_35, %c0_36, %c0_37], %53 {strides = array<i32>} : memref<1x8x8x128xf32, #tpu.memory_space<vmem>>, vector<1x8x8x128xf32>,
    return
  }
  func.func @transform_0(%arg0: i32) -> (i32, i32, i32, i32) {
    %c0_i32 = arith.constant 0 : i32
    %c0_i32_0 = arith.constant 0 : i32
    %c0_i32_1 = arith.constant 0 : i32
    %c0_i32_2 = arith.constant 0 : i32
    return %arg0, %c0_i32, %c0_i32_0, %c0_i32_1 : i32, i32, i32, i32
  }
  func.func @transform_1(%arg0: i32) -> (i32, i32, i32, i32) {
    %c0_i32 = arith.constant 0 : i32
    %c0_i32_0 = arith.constant 0 : i32
    %c0_i32_1 = arith.constant 0 : i32
    %c0_i32_2 = arith.constant 0 : i32
    return %arg0, %c0_i32, %c0_i32_0, %c0_i32_1 : i32, i32, i32, i32
  }
  func.func @transform_2(%arg0: i32) -> (i32, i32) {
    %c0_i32 = arith.constant 0 : i32
    %c0_i32_0 = arith.constant 0 : i32
    %c0_i32_1 = arith.constant 0 : i32
    return %c0_i32, %c0_i32_0 : i32, i32
  }
  func.func @transform_3(%arg0: i32) -> (i32, i32, i32) {
    %c0_i32 = arith.constant 0 : i32
    %c0_i32_0 = arith.constant 0 : i32
    %c0_i32_1 = arith.constant 0 : i32
    %c0_i32_2 = arith.constant 0 : i32
    return %c0_i32, %c0_i32_0, %c0_i32_1 : i32, i32, i32
  }
  func.func @transform_4(%arg0: i32) -> (i32, i32) {
    %c0_i32 = arith.constant 0 : i32
    %c0_i32_0 = arith.constant 0 : i32
    %c0_i32_1 = arith.constant 0 : i32
    return %c0_i32, %c0_i32_0 : i32, i32
  }
  func.func @transform_5(%arg0: i32) -> (i32, i32, i32, i32) {
    %c0_i32 = arith.constant 0 : i32
    %c0_i32_0 = arith.constant 0 : i32
    %c0_i32_1 = arith.constant 0 : i32
    %c0_i32_2 = arith.constant 0 : i32
    return %arg0, %c0_i32, %c0_i32_0, %c0_i32_1 : i32, i32, i32, i32
  }
}

module attributes {stable_mosaic.version = 11 : i64} {
  func.func @_stage1_kernel(%arg0: i32, %arg1: memref<128x64xbf16, #tpu.memory_space<vmem>>, %arg2: memref<4x64xf32, #tpu.memory_space<vmem>>, %arg3: memref<2x128xf32, #tpu.memory_space<vmem>>, %arg4: memref<64x128xbf16, #tpu.memory_space<vmem>>, %arg5: memref<64x128xbf16, #tpu.memory_space<vmem>>, %arg6: memref<128x128xbf16, #tpu.memory_space<vmem>>, %arg7: memref<128x128xbf16, #tpu.memory_space<vmem>>) attributes {dimension_semantics = [#tpu.dimension_semantics<parallel>], iteration_bounds = array<i64: 1>, scalar_prefetch = 0 : i64, scratch_operands = 0 : i64, tpu.core_type = #tpu.core_type<tc>, window_params = [{transform_indices = @transform_0, window_bounds = array<i64: 128, 64>}, {pipeline_mode = #tpu.pipeline_mode<synchronous>, transform_indices = @transform_1, window_bounds = array<i64: 4, 64>}, {pipeline_mode = #tpu.pipeline_mode<synchronous>, transform_indices = @transform_2, window_bounds = array<i64: 2, 128>}, {pipeline_mode = #tpu.pipeline_mode<synchronous>, transform_indices = @transform_3, window_bounds = array<i64: 64, 128>}, {pipeline_mode = #tpu.pipeline_mode<synchronous>, transform_indices = @transform_4, window_bounds = array<i64: 64, 128>}, {transform_indices = @transform_5, window_bounds = array<i64: 128, 128>}, {transform_indices = @transform_6, window_bounds = array<i64: 128, 128>}]} {
    %c0 = arith.constant 0 : index
    %c0_0 = arith.constant 0 : index
    %0 = vector.load %arg1[%c0, %c0_0] : memref<128x64xbf16, #tpu.memory_space<vmem>>, vector<128x64xbf16>
    %1 = arith.extf %0 : vector<128x64xbf16> to vector<128x64xf32>
    %c0_1 = arith.constant 0 : index
    %c0_2 = arith.constant 0 : index
    %2 = vector.load %arg2[%c0_1, %c0_2] : memref<4x64xf32, #tpu.memory_space<vmem>>, vector<1x64xf32>
    %3 = vector.broadcast %2 : vector<1x64xf32> to vector<128x64xf32>
    %4 = arith.mulf %1, %3 : vector<128x64xf32>
    %c1 = arith.constant 1 : index
    %c0_3 = arith.constant 0 : index
    %5 = vector.load %arg2[%c1, %c0_3] : memref<4x64xf32, #tpu.memory_space<vmem>>, vector<1x64xf32>
    %6 = vector.broadcast %5 : vector<1x64xf32> to vector<128x64xf32>
    %7 = arith.addf %4, %6 : vector<128x64xf32>
    %cst = arith.constant 0.000000e+00 : f32
    %8 = vector.broadcast %cst : f32 to vector<128x64xf32>
    %9 = arith.maximumf %7, %8 : vector<128x64xf32>
    %c2 = arith.constant 2 : index
    %c0_4 = arith.constant 0 : index
    %10 = vector.load %arg2[%c2, %c0_4] : memref<4x64xf32, #tpu.memory_space<vmem>>, vector<1x64xf32>
    %11 = vector.broadcast %10 : vector<1x64xf32> to vector<128x64xf32>
    %12 = arith.mulf %1, %11 : vector<128x64xf32>
    %c3 = arith.constant 3 : index
    %c0_5 = arith.constant 0 : index
    %13 = vector.load %arg2[%c3, %c0_5] : memref<4x64xf32, #tpu.memory_space<vmem>>, vector<1x64xf32>
    %14 = vector.broadcast %13 : vector<1x64xf32> to vector<128x64xf32>
    %15 = arith.addf %12, %14 : vector<128x64xf32>
    %cst_6 = arith.constant 0.000000e+00 : f32
    %16 = vector.broadcast %cst_6 : f32 to vector<128x64xf32>
    %17 = arith.maximumf %15, %16 : vector<128x64xf32>
    %18 = arith.truncf %9 : vector<128x64xf32> to vector<128x64xbf16>
    %c0_7 = arith.constant 0 : index
    %c0_8 = arith.constant 0 : index
    %19 = vector.load %arg4[%c0_7, %c0_8] : memref<64x128xbf16, #tpu.memory_space<vmem>>, vector<64x128xbf16>
    %cst_9 = arith.constant dense<0.000000e+00> : vector<128x128xf32>
    %20 = tpu.matmul %18, %19, %cst_9 {dimension_numbers = #tpu.dot_dimension_numbers<[1], [0], [0], [1], [0, 0, 1, 1], [], []>} : vector<128x64xbf16>, vector<64x128xbf16>, vector<128x128xf32> -> vector<128x128xf32>
    %21 = arith.truncf %20 : vector<128x128xf32> to vector<128x128xbf16>
    %c0_10 = arith.constant 0 : index
    %c0_11 = arith.constant 0 : index
    %22 = vector.load %arg6[%c0_10, %c0_11] : memref<128x128xbf16, #tpu.memory_space<vmem>>, vector<128x128xbf16>
    tpu.vector_store %arg6[%c0_10, %c0_11], %21 {strides = array<i32>} : memref<128x128xbf16, #tpu.memory_space<vmem>>, vector<128x128xbf16>,
    %23 = arith.truncf %17 : vector<128x64xf32> to vector<128x64xbf16>
    %c0_12 = arith.constant 0 : index
    %c0_13 = arith.constant 0 : index
    %24 = vector.load %arg5[%c0_12, %c0_13] : memref<64x128xbf16, #tpu.memory_space<vmem>>, vector<64x128xbf16>
    %cst_14 = arith.constant dense<0.000000e+00> : vector<128x128xf32>
    %25 = tpu.matmul %23, %24, %cst_14 {dimension_numbers = #tpu.dot_dimension_numbers<[1], [0], [0], [1], [0, 0, 1, 1], [], []>} : vector<128x64xbf16>, vector<64x128xbf16>, vector<128x128xf32> -> vector<128x128xf32>
    %c0_15 = arith.constant 0 : index
    %c0_16 = arith.constant 0 : index
    %26 = vector.load %arg3[%c0_15, %c0_16] : memref<2x128xf32, #tpu.memory_space<vmem>>, vector<1x128xf32>
    %27 = vector.broadcast %26 : vector<1x128xf32> to vector<128x128xf32>
    %28 = arith.mulf %25, %27 : vector<128x128xf32>
    %c1_17 = arith.constant 1 : index
    %c0_18 = arith.constant 0 : index
    %29 = vector.load %arg3[%c1_17, %c0_18] : memref<2x128xf32, #tpu.memory_space<vmem>>, vector<1x128xf32>
    %30 = vector.broadcast %29 : vector<1x128xf32> to vector<128x128xf32>
    %31 = arith.addf %28, %30 : vector<128x128xf32>
    %cst_19 = arith.constant 0.000000e+00 : f32
    %32 = vector.broadcast %cst_19 : f32 to vector<128x128xf32>
    %33 = arith.maximumf %31, %32 : vector<128x128xf32>
    %34 = arith.truncf %33 : vector<128x128xf32> to vector<128x128xbf16>
    %c0_20 = arith.constant 0 : index
    %c0_21 = arith.constant 0 : index
    %35 = vector.load %arg7[%c0_20, %c0_21] : memref<128x128xbf16, #tpu.memory_space<vmem>>, vector<128x128xbf16>
    tpu.vector_store %arg7[%c0_20, %c0_21], %34 {strides = array<i32>} : memref<128x128xbf16, #tpu.memory_space<vmem>>, vector<128x128xbf16>,
    return
  }
  func.func @transform_0(%arg0: i32) -> (i32, i32) {
    %c0_i32 = arith.constant 0 : i32
    %c0_i32_0 = arith.constant 0 : i32
    return %arg0, %c0_i32 : i32, i32
  }
  func.func @transform_1(%arg0: i32) -> (i32, i32) {
    %c0_i32 = arith.constant 0 : i32
    %c0_i32_0 = arith.constant 0 : i32
    %c0_i32_1 = arith.constant 0 : i32
    return %c0_i32, %c0_i32_0 : i32, i32
  }
  func.func @transform_2(%arg0: i32) -> (i32, i32) {
    %c0_i32 = arith.constant 0 : i32
    %c0_i32_0 = arith.constant 0 : i32
    %c0_i32_1 = arith.constant 0 : i32
    return %c0_i32, %c0_i32_0 : i32, i32
  }
  func.func @transform_3(%arg0: i32) -> (i32, i32) {
    %c0_i32 = arith.constant 0 : i32
    %c0_i32_0 = arith.constant 0 : i32
    %c0_i32_1 = arith.constant 0 : i32
    return %c0_i32, %c0_i32_0 : i32, i32
  }
  func.func @transform_4(%arg0: i32) -> (i32, i32) {
    %c0_i32 = arith.constant 0 : i32
    %c0_i32_0 = arith.constant 0 : i32
    %c0_i32_1 = arith.constant 0 : i32
    return %c0_i32, %c0_i32_0 : i32, i32
  }
  func.func @transform_5(%arg0: i32) -> (i32, i32) {
    %c0_i32 = arith.constant 0 : i32
    %c0_i32_0 = arith.constant 0 : i32
    return %arg0, %c0_i32 : i32, i32
  }
  func.func @transform_6(%arg0: i32) -> (i32, i32) {
    %c0_i32 = arith.constant 0 : i32
    %c0_i32_0 = arith.constant 0 : i32
    return %arg0, %c0_i32 : i32, i32
  }
}

</mosaic_0001>

<llo_original>
// kernel: dual_path_block.2
$region0: #{dual_path_block.2}
  #allocation0 [shape = 'u32[]', space=smem, size = 0x4, offset = 0x4, fixed_abs, tag = 'smem constant byte address 0x4 - core index']
  #allocation1 [shape = 'u32[72,128]{1,0:T(1,128)}', space=vmem, size = 0x9000, scoped, tag = 'internal scratch']
  %s0 = inlined_call_operand.vmem [shape: bf16[128,64], index: 0, kind: input, shape index: {}]
  %s1 = inlined_call_operand.vmem [shape: f32[4,64], index: 1, kind: input, shape index: {}]
  %s2 = inlined_call_operand.vmem [shape: f32[2,128], index: 2, kind: input, shape index: {}]
  %s3 = inlined_call_operand.vmem [shape: bf16[64,128], index: 3, kind: input, shape index: {}]
  %s4 = inlined_call_operand.hbm [shape: bf16[64,128], index: 4, kind: input, shape index: {}]
  %s5 = inlined_call_operand.vmem [shape: bf16[128,128], index: 5, kind: output, shape index: {0}]
  %s6 = inlined_call_operand.vmem [shape: bf16[128,128], index: 6, kind: output, shape index: {1}]
  %7 = xla_tuple %s5, %s6
  %s8 = sld [smem:[#allocation0]]
  $region42: #{dual_path_block.2} parent=0
    _
  %s10 = ssub.s32 1, %s8
  %s11 = scalar_select 0, %s10, %s8
  $region1: #{dual_path_block.2} parent=0
    #allocation2 [shape = 'u8[16384]{0}', space=vmem, size = 0x4000, scoped, tag = 'input window, operand 4, single buffered']
    #allocation3 [shape = 's32[1]{0}', space=sflag, size = 0x4, scoped, tag = 'scoped memory for dual_path_block.2']
    %12 = vsyncpa [#allocation3], 0
    // Predicated region
    $region2: #{dual_path_block.2} parent=1 // pred_check
      _
    $region3: #{dual_path_block.2} parent=1 // pred_check_branch
      %14 = sbr.rel (0) target = $region5
    $region4: #{dual_path_block.2} parent=1 // pred_region
      _
    $region5: #{dual_path_block.2} parent=1 // pred_fallthru
      _
    // Predicated region
    $region6: #{dual_path_block.2} parent=1 // pred_check
      _
    $region7: #{dual_path_block.2} parent=1 // pred_check_branch
      %16 = sbr.rel (0) target = $region9
    $region8: #{dual_path_block.2} parent=1 // pred_region
      _
    $region9: #{dual_path_block.2} parent=1 // pred_fallthru
      _
    // Predicated region
    $region10: #{dual_path_block.2} parent=1 // pred_check
      _
    $region11: #{dual_path_block.2} parent=1 // pred_check_branch
      %18 = sbr.rel (0) target = $region13
    $region12: #{dual_path_block.2} parent=1 // pred_region
      _
    $region13: #{dual_path_block.2} parent=1 // pred_fallthru
      _
    // Predicated region
    $region14: #{dual_path_block.2} parent=1 // pred_check
      _
    $region15: #{dual_path_block.2} parent=1 // pred_check_branch
      %20 = sbr.rel (0) target = $region17
    $region16: #{dual_path_block.2} parent=1 // pred_region
      _
    $region17: #{dual_path_block.2} parent=1 // pred_fallthru
      _
    // Predicated region
    $region18: #{dual_path_block.2} parent=1 // pred_check
      _
    $region19: #{dual_path_block.2} parent=1 // pred_check_branch
      %22 = sbr.rel (0) target = $region21
    $region20: #{dual_path_block.2} parent=1 // pred_region
      %24 = vsyncadd [#allocation3], 0
      %s25 = sshll.u32 %s4, 4
      %s26 = int_to_ptr.hbm [resolvable:$true] %s25
      %s27 = sshll.u32 [#allocation2], 4
      %s28 = int_to_ptr.vmem [resolvable:$true] %s27
      %33 = dma.hbm_to_vmem [thread:$0]  %s26, 512, %s28, [#allocation3], 64, 64, 4
    $region21: #{dual_path_block.2} parent=1 // pred_fallthru
      _
    // Predicated region
    $region22: #{dual_path_block.2} parent=1 // pred_check
      _
    $region23: #{dual_path_block.2} parent=1 // pred_check_branch
      %35 = sbr.rel (0) target = $region25
    $region24: #{dual_path_block.2} parent=1 // pred_region
      %37 = dma.done [#allocation3], 512
    $region25: #{dual_path_block.2} parent=1 // pred_fallthru
      _
    %v39 = vld [vmem:[%s0] sm:$0xf]
    %v40 = vld [vmem:[%s0 + $0x4] sm:$0xf]
    %v41 = vld [vmem:[%s0 + $0x8] sm:$0xf]
    %v42 = vld [vmem:[%s0 + $0xc] sm:$0xf]
    %v43 = vld [vmem:[%s0 + $0x10] sm:$0xf]
    %v44 = vld [vmem:[%s0 + $0x14] sm:$0xf]
    %v45 = vld [vmem:[%s0 + $0x18] sm:$0xf]
    %v46 = vld [vmem:[%s0 + $0x1c] sm:$0xf]
    %v47 = vld [vmem:[%s0 + $0x20] sm:$0xf]
    %v48 = vld [vmem:[%s0 + $0x24] sm:$0xf]
    %v49 = vld [vmem:[%s0 + $0x28] sm:$0xf]
    %v50 = vld [vmem:[%s0 + $0x2c] sm:$0xf]
    %v51 = vld [vmem:[%s0 + $0x30] sm:$0xf]
    %v52 = vld [vmem:[%s0 + $0x34] sm:$0xf]
    %v53 = vld [vmem:[%s0 + $0x38] sm:$0xf]
    %v54 = vld [vmem:[%s0 + $0x3c] sm:$0xf]
    %v55 = vunpack.c.l.bf16 %v39
    %v56 = vunpack.c.l.bf16 %v40
    %v57 = vunpack.c.l.bf16 %v41
    %v58 = vunpack.c.l.bf16 %v42
    %v59 = vunpack.c.l.bf16 %v43
    %v60 = vunpack.c.l.bf16 %v44
    %v61 = vunpack.c.l.bf16 %v45
    %v62 = vunpack.c.l.bf16 %v46
    %v63 = vunpack.c.l.bf16 %v47
    %v64 = vunpack.c.l.bf16 %v48
    %v65 = vunpack.c.l.bf16 %v49
    %v66 = vunpack.c.l.bf16 %v50
    %v67 = vunpack.c.l.bf16 %v51
    %v68 = vunpack.c.l.bf16 %v52
    %v69 = vunpack.c.l.bf16 %v53
    %v70 = vunpack.c.l.bf16 %v54
    %v71 = vld [vmem:[%s1] sm:$0x1]
    %v72 = vperm.slane %v71, 0
    %v73 = vmul.f32 %v55, %v72
    %v74 = vmul.f32 %v56, %v72
    %v75 = vmul.f32 %v57, %v72
    %v76 = vmul.f32 %v58, %v72
    %v77 = vmul.f32 %v59, %v72
    %v78 = vmul.f32 %v60, %v72
    %v79 = vmul.f32 %v61, %v72
    %v80 = vmul.f32 %v62, %v72
    %v81 = vmul.f32 %v63, %v72
    %v82 = vmul.f32 %v64, %v72
    %v83 = vmul.f32 %v65, %v72
    %v84 = vmul.f32 %v66, %v72
    %v85 = vmul.f32 %v67, %v72
    %v86 = vmul.f32 %v68, %v72
    %v87 = vmul.f32 %v69, %v72
    %v88 = vmul.f32 %v70, %v72
    %v89 = vld [vmem:[%s1 + $0x1] sm:$0x1]
    %v90 = vperm.slane %v89, 0
    %v91 = vadd.f32 %v73, %v90
    %v92 = vadd.f32 %v74, %v90
    %v93 = vadd.f32 %v75, %v90
    %v94 = vadd.f32 %v76, %v90
    %v95 = vadd.f32 %v77, %v90
    %v96 = vadd.f32 %v78, %v90
    %v97 = vadd.f32 %v79, %v90
    %v98 = vadd.f32 %v80, %v90
    %v99 = vadd.f32 %v81, %v90
    %v100 = vadd.f32 %v82, %v90
    %v101 = vadd.f32 %v83, %v90
    %v102 = vadd.f32 %v84, %v90
    %v103 = vadd.f32 %v85, %v90
    %v104 = vadd.f32 %v86, %v90
    %v105 = vadd.f32 %v87, %v90
    %v106 = vadd.f32 %v88, %v90
    %v107 = vmax.f32 %v91, 0.0
    %v108 = vmax.f32 %v92, 0.0
    %v109 = vmax.f32 %v93, 0.0
    %v110 = vmax.f32 %v94, 0.0
    %v111 = vmax.f32 %v95, 0.0
    %v112 = vmax.f32 %v96, 0.0
    %v113 = vmax.f32 %v97, 0.0
    %v114 = vmax.f32 %v98, 0.0
    %v115 = vmax.f32 %v99, 0.0
    %v116 = vmax.f32 %v100, 0.0
    %v117 = vmax.f32 %v101, 0.0
    %v118 = vmax.f32 %v102, 0.0
    %v119 = vmax.f32 %v103, 0.0
    %v120 = vmax.f32 %v104, 0.0
    %v121 = vmax.f32 %v105, 0.0
    %v122 = vmax.f32 %v106, 0.0
    %v123 = vld [vmem:[%s1 + $0x2] sm:$0x1]
    %v124 = vperm.slane %v123, 0
    %v125 = vmul.f32 %v55, %v124
    %v126 = vmul.f32 %v56, %v124
    %v127 = vmul.f32 %v57, %v124
    %v128 = vmul.f32 %v58, %v124
    %v129 = vmul.f32 %v59, %v124
    %v130 = vmul.f32 %v60, %v124
    %v131 = vmul.f32 %v61, %v124
    %v132 = vmul.f32 %v62, %v124
    %v133 = vmul.f32 %v63, %v124
    %v134 = vmul.f32 %v64, %v124
    %v135 = vmul.f32 %v65, %v124
    %v136 = vmul.f32 %v66, %v124
    %v137 = vmul.f32 %v67, %v124
    %v138 = vmul.f32 %v68, %v124
    %v139 = vmul.f32 %v69, %v124
    %v140 = vmul.f32 %v70, %v124
    %v141 = vld [vmem:[%s1 + $0x3] sm:$0x1]
    %v142 = vperm.slane %v141, 0
    %v143 = vadd.f32 %v125, %v142
    %v144 = vadd.f32 %v126, %v142
    %v145 = vadd.f32 %v127, %v142
    %v146 = vadd.f32 %v128, %v142
    %v147 = vadd.f32 %v129, %v142
    %v148 = vadd.f32 %v130, %v142
    %v149 = vadd.f32 %v131, %v142
    %v150 = vadd.f32 %v132, %v142
    %v151 = vadd.f32 %v133, %v142
    %v152 = vadd.f32 %v134, %v142
    %v153 = vadd.f32 %v135, %v142
    %v154 = vadd.f32 %v136, %v142
    %v155 = vadd.f32 %v137, %v142
    %v156 = vadd.f32 %v138, %v142
    %v157 = vadd.f32 %v139, %v142
    %v158 = vadd.f32 %v140, %v142
    %v159 = vmax.f32 %v143, 0.0
    %v160 = vmax.f32 %v144, 0.0
    %v161 = vmax.f32 %v145, 0.0
    %v162 = vmax.f32 %v146, 0.0
    %v163 = vmax.f32 %v147, 0.0
    %v164 = vmax.f32 %v148, 0.0
    %v165 = vmax.f32 %v149, 0.0
    %v166 = vmax.f32 %v150, 0.0
    %v167 = vmax.f32 %v151, 0.0
    %v168 = vmax.f32 %v152, 0.0
    %v169 = vmax.f32 %v153, 0.0
    %v170 = vmax.f32 %v154, 0.0
    %v171 = vmax.f32 %v155, 0.0
    %v172 = vmax.f32 %v156, 0.0
    %v173 = vmax.f32 %v157, 0.0
    %v174 = vmax.f32 %v158, 0.0
    %v175 = vpack.c.bf16 %v108, %v107
    %v176 = vpack.c.bf16 %v110, %v109
    %v177 = vpack.c.bf16 %v112, %v111
    %v178 = vpack.c.bf16 %v114, %v113
    %v179 = vpack.c.bf16 %v116, %v115
    %v180 = vpack.c.bf16 %v118, %v117
    %v181 = vpack.c.bf16 %v120, %v119
    %v182 = vpack.c.bf16 %v122, %v121
    %v183 = vld [vmem:[%s3] sm:$0xf]
    %v184 = vld [vmem:[%s3 + $0x4] sm:$0xf]
    %v185 = vld [vmem:[%s3 + $0x8] sm:$0xf]
    %v186 = vld [vmem:[%s3 + $0xc] sm:$0xf]
    %v187 = vld [vmem:[%s3 + $0x10] sm:$0xf]
    %v188 = vld [vmem:[%s3 + $0x14] sm:$0xf]
    %v189 = vld [vmem:[%s3 + $0x18] sm:$0xf]
    %v190 = vld [vmem:[%s3 + $0x1c] sm:$0xf]
    %v199 = vunpack.c.l.b16 %v183
    %v200 = vunpack.c.l.b16 %v184
    %v201 = vunpack.c.l.b16 %v185
    %v202 = vunpack.c.l.b16 %v186
    %v203 = vunpack.c.l.b16 %v187
    %v204 = vunpack.c.l.b16 %v188
    %v205 = vunpack.c.l.b16 %v189
    %v206 = vunpack.c.l.b16 %v190
    %v207 = vpack.c.b16 %v200, %v199
    %v208 = vpack.c.b16 %v202, %v201
    %v209 = vpack.c.b16 %v204, %v203
    %v210 = vpack.c.b16 %v206, %v205
    %vm215 = vcmask 523264
    %v217 = vsel %vm215, %v175, 0
    %v220 = vsel %vm215, %v176, 0
    %v223 = vsel %vm215, %v177, 0
    %v226 = vsel %vm215, %v178, 0
    %v229 = vsel %vm215, %v179, 0
    %v232 = vsel %vm215, %v180, 0
    %v235 = vsel %vm215, %v181, 0
    %v238 = vsel %vm215, %v182, 0
    %240 = vmatpush.bf16.msra.mxu0 0
    %241 = vmatpush.bf16.msra.mxu0 0
    %242 = vmatpush.bf16.msra.mxu0 0
    %243 = vmatpush.bf16.msra.mxu0 0
    %244 = vmatpush.bf16.msra.mxu0 %v210
    %245 = vmatpush.bf16.msra.mxu0 %v209
    %246 = vmatpush.bf16.msra.mxu0 %v208
    %247 = vmatpush.bf16.msra.mxu0 %v207
    %248 = vmatmul.bf16.gmra.mxu0 %v217
    %v249 = vpop.f32.mrf.mxu0
    %v250 = vadd.f32 0.0, %v249
    %v251 = vpop.f32.mrf.mxu0
    %v252 = vadd.f32 0.0, %v251
    %253 = vmatmul.bf16.gmra.mxu0 %v220
    %v254 = vpop.f32.mrf.mxu0
    %v255 = vadd.f32 0.0, %v254
    %v256 = vpop.f32.mrf.mxu0
    %v257 = vadd.f32 0.0, %v256
    %258 = vmatmul.bf16.gmra.mxu0 %v223
    %v259 = vpop.f32.mrf.mxu0
    %v260 = vadd.f32 0.0, %v259
    %v261 = vpop.f32.mrf.mxu0
    %v262 = vadd.f32 0.0, %v261
    %263 = vmatmul.bf16.gmra.mxu0 %v226
    %v264 = vpop.f32.mrf.mxu0
    %v265 = vadd.f32 0.0, %v264
    %v266 = vpop.f32.mrf.mxu0
    %v267 = vadd.f32 0.0, %v266
    %268 = vmatmul.bf16.gmra.mxu0 %v229
    %v269 = vpop.f32.mrf.mxu0
    %v270 = vadd.f32 0.0, %v269
    %v271 = vpop.f32.mrf.mxu0
    %v272 = vadd.f32 0.0, %v271
    %273 = vmatmul.bf16.gmra.mxu0 %v232
    %v274 = vpop.f32.mrf.mxu0
    %v275 = vadd.f32 0.0, %v274
    %v276 = vpop.f32.mrf.mxu0
    %v277 = vadd.f32 0.0, %v276
    %278 = vmatmul.bf16.gmra.mxu0 %v235
    %v279 = vpop.f32.mrf.mxu0
    %v280 = vadd.f32 0.0, %v279
    %v281 = vpop.f32.mrf.mxu0
    %v282 = vadd.f32 0.0, %v281
    %283 = vmatmul.bf16.gmra.mxu0 %v238
    %v284 = vpop.f32.mrf.mxu0
    %v285 = vadd.f32 0.0, %v284
    %v286 = vpop.f32.mrf.mxu0
    %v287 = vadd.f32 0.0, %v286
    %288 = vdwg.mxu0
    %v289 = vpack.c.bf16 %v250, %v250
    %v290 = vpack.c.bf16 %v252, %v252
    %v291 = vpack.c.bf16 %v255, %v255
    %v292 = vpack.c.bf16 %v257, %v257
    %v293 = vpack.c.bf16 %v260, %v260
    %v294 = vpack.c.bf16 %v262, %v262
    %v295 = vpack.c.bf16 %v265, %v265
    %v296 = vpack.c.bf16 %v267, %v267
    %v297 = vpack.c.bf16 %v270, %v270
    %v298 = vpack.c.bf16 %v272, %v272
    %v299 = vpack.c.bf16 %v275, %v275
    %v300 = vpack.c.bf16 %v277, %v277
    %v301 = vpack.c.bf16 %v280, %v280
    %v302 = vpack.c.bf16 %v282, %v282
    %v303 = vpack.c.bf16 %v285, %v285
    %v304 = vpack.c.bf16 %v287, %v287
    %305 = vst [vmem:[%s5] sm:$0xf] %v289
    %306 = vst [vmem:[%s5 + $0x4] sm:$0xf] %v290
    %307 = vst [vmem:[%s5 + $0x8] sm:$0xf] %v291
    %308 = vst [vmem:[%s5 + $0xc] sm:$0xf] %v292
    %309 = vst [vmem:[%s5 + $0x10] sm:$0xf] %v293
    %310 = vst [vmem:[%s5 + $0x14] sm:$0xf] %v294
    %311 = vst [vmem:[%s5 + $0x18] sm:$0xf] %v295
    %312 = vst [vmem:[%s5 + $0x1c] sm:$0xf] %v296
    %313 = vst [vmem:[%s5 + $0x20] sm:$0xf] %v297
    %314 = vst [vmem:[%s5 + $0x24] sm:$0xf] %v298
    %315 = vst [vmem:[%s5 + $0x28] sm:$0xf] %v299
    %316 = vst [vmem:[%s5 + $0x2c] sm:$0xf] %v300
    %317 = vst [vmem:[%s5 + $0x30] sm:$0xf] %v301
    %318 = vst [vmem:[%s5 + $0x34] sm:$0xf] %v302
    %319 = vst [vmem:[%s5 + $0x38] sm:$0xf] %v303
    %320 = vst [vmem:[%s5 + $0x3c] sm:$0xf] %v304
    %v321 = vpack.c.bf16 %v160, %v159
    %v322 = vpack.c.bf16 %v162, %v161
    %v323 = vpack.c.bf16 %v164, %v163
    %v324 = vpack.c.bf16 %v166, %v165
    %v325 = vpack.c.bf16 %v168, %v167
    %v326 = vpack.c.bf16 %v170, %v169
    %v327 = vpack.c.bf16 %v172, %v171
    %v328 = vpack.c.bf16 %v174, %v173
    %v329 = vld [vmem:[#allocation2] sm:$0xf]
    %v330 = vld [vmem:[#allocation2 + $0x4] sm:$0xf]
    %v331 = vld [vmem:[#allocation2 + $0x8] sm:$0xf]
    %v332 = vld [vmem:[#allocation2 + $0xc] sm:$0xf]
    %v333 = vld [vmem:[#allocation2 + $0x10] sm:$0xf]
    %v334 = vld [vmem:[#allocation2 + $0x14] sm:$0xf]
    %v335 = vld [vmem:[#allocation2 + $0x18] sm:$0xf]
    %v336 = vld [vmem:[#allocation2 + $0x1c] sm:$0xf]
    %v345 = vunpack.c.l.b16 %v329
    %v346 = vunpack.c.l.b16 %v330
    %v347 = vunpack.c.l.b16 %v331
    %v348 = vunpack.c.l.b16 %v332
    %v349 = vunpack.c.l.b16 %v333
    %v350 = vunpack.c.l.b16 %v334
    %v351 = vunpack.c.l.b16 %v335
    %v352 = vunpack.c.l.b16 %v336
    %v353 = vpack.c.b16 %v346, %v345
    %v354 = vpack.c.b16 %v348, %v347
    %v355 = vpack.c.b16 %v350, %v349
    %v356 = vpack.c.b16 %v352, %v351
    %v362 = vsel %vm215, %v321, 0
    %v365 = vsel %vm215, %v322, 0
    %v368 = vsel %vm215, %v323, 0
    %v371 = vsel %vm215, %v324, 0
    %v374 = vsel %vm215, %v325, 0
    %v377 = vsel %vm215, %v326, 0
    %v380 = vsel %vm215, %v327, 0
    %v383 = vsel %vm215, %v328, 0
    %385 = vmatpush.bf16.msra.mxu0 0
    %386 = vmatpush.bf16.msra.mxu0 0
    %387 = vmatpush.bf16.msra.mxu0 0
    %388 = vmatpush.bf16.msra.mxu0 0
    %389 = vmatpush.bf16.msra.mxu0 %v356
    %390 = vmatpush.bf16.msra.mxu0 %v355
    %391 = vmatpush.bf16.msra.mxu0 %v354
    %392 = vmatpush.bf16.msra.mxu0 %v353
    %393 = vmatmul.bf16.gmra.mxu0 %v362
    %v394 = vpop.f32.mrf.mxu0
    %v395 = vadd.f32 0.0, %v394
    %v396 = vpop.f32.mrf.mxu0
    %v397 = vadd.f32 0.0, %v396
    %398 = vmatmul.bf16.gmra.mxu0 %v365
    %v399 = vpop.f32.mrf.mxu0
    %v400 = vadd.f32 0.0, %v399
    %v401 = vpop.f32.mrf.mxu0
    %v402 = vadd.f32 0.0, %v401
    %403 = vmatmul.bf16.gmra.mxu0 %v368
    %v404 = vpop.f32.mrf.mxu0
    %v405 = vadd.f32 0.0, %v404
    %v406 = vpop.f32.mrf.mxu0
    %v407 = vadd.f32 0.0, %v406
    %408 = vmatmul.bf16.gmra.mxu0 %v371
    %v409 = vpop.f32.mrf.mxu0
    %v410 = vadd.f32 0.0, %v409
    %v411 = vpop.f32.mrf.mxu0
    %v412 = vadd.f32 0.0, %v411
    %413 = vmatmul.bf16.gmra.mxu0 %v374
    %v414 = vpop.f32.mrf.mxu0
    %v415 = vadd.f32 0.0, %v414
    %v416 = vpop.f32.mrf.mxu0
    %v417 = vadd.f32 0.0, %v416
    %418 = vmatmul.bf16.gmra.mxu0 %v377
    %v419 = vpop.f32.mrf.mxu0
    %v420 = vadd.f32 0.0, %v419
    %v421 = vpop.f32.mrf.mxu0
    %v422 = vadd.f32 0.0, %v421
    %423 = vmatmul.bf16.gmra.mxu0 %v380
    %v424 = vpop.f32.mrf.mxu0
    %v425 = vadd.f32 0.0, %v424
    %v426 = vpop.f32.mrf.mxu0
    %v427 = vadd.f32 0.0, %v426
    %428 = vmatmul.bf16.gmra.mxu0 %v383
    %v429 = vpop.f32.mrf.mxu0
    %v430 = vadd.f32 0.0, %v429
    %v431 = vpop.f32.mrf.mxu0
    %v432 = vadd.f32 0.0, %v431
    %433 = vdwg.mxu0
    %v434 = vld [vmem:[%s2] sm:$0x1]
    %v435 = vperm.slane %v434, 0
    %v436 = vmul.f32 %v395, %v435
    %v437 = vmul.f32 %v397, %v435
    %v438 = vmul.f32 %v400, %v435
    %v439 = vmul.f32 %v402, %v435
    %v440 = vmul.f32 %v405, %v435
    %v441 = vmul.f32 %v407, %v435
    %v442 = vmul.f32 %v410, %v435
    %v443 = vmul.f32 %v412, %v435
    %v444 = vmul.f32 %v415, %v435
    %v445 = vmul.f32 %v417, %v435
    %v446 = vmul.f32 %v420, %v435
    %v447 = vmul.f32 %v422, %v435
    %v448 = vmul.f32 %v425, %v435
    %v449 = vmul.f32 %v427, %v435
    %v450 = vmul.f32 %v430, %v435
    %v451 = vmul.f32 %v432, %v435
    %v452 = vld [vmem:[%s2 + $0x1] sm:$0x1]
    %v453 = vperm.slane %v452, 0
    %v454 = vadd.f32 %v436, %v453
    %v455 = vadd.f32 %v437, %v453
    %v456 = vadd.f32 %v438, %v453
    %v457 = vadd.f32 %v439, %v453
    %v458 = vadd.f32 %v440, %v453
    %v459 = vadd.f32 %v441, %v453
    %v460 = vadd.f32 %v442, %v453
    %v461 = vadd.f32 %v443, %v453
    %v462 = vadd.f32 %v444, %v453
    %v463 = vadd.f32 %v445, %v453
    %v464 = vadd.f32 %v446, %v453
    %v465 = vadd.f32 %v447, %v453
    %v466 = vadd.f32 %v448, %v453
    %v467 = vadd.f32 %v449, %v453
    %v468 = vadd.f32 %v450, %v453
    %v469 = vadd.f32 %v451, %v453
    %v470 = vmax.f32 %v454, 0.0
    %v471 = vmax.f32 %v455, 0.0
    %v472 = vmax.f32 %v456, 0.0
    %v473 = vmax.f32 %v457, 0.0
    %v474 = vmax.f32 %v458, 0.0
    %v475 = vmax.f32 %v459, 0.0
    %v476 = vmax.f32 %v460, 0.0
    %v477 = vmax.f32 %v461, 0.0
    %v478 = vmax.f32 %v462, 0.0
    %v479 = vmax.f32 %v463, 0.0
    %v480 = vmax.f32 %v464, 0.0
    %v481 = vmax.f32 %v465, 0.0
    %v482 = vmax.f32 %v466, 0.0
    %v483 = vmax.f32 %v467, 0.0
    %v484 = vmax.f32 %v468, 0.0
    %v485 = vmax.f32 %v469, 0.0
    %v486 = vpack.c.bf16 %v470, %v470
    %v487 = vpack.c.bf16 %v471, %v471
    %v488 = vpack.c.bf16 %v472, %v472
    %v489 = vpack.c.bf16 %v473, %v473
    %v490 = vpack.c.bf16 %v474, %v474
    %v491 = vpack.c.bf16 %v475, %v475
    %v492 = vpack.c.bf16 %v476, %v476
    %v493 = vpack.c.bf16 %v477, %v477
    %v494 = vpack.c.bf16 %v478, %v478
    %v495 = vpack.c.bf16 %v479, %v479
    %v496 = vpack.c.bf16 %v480, %v480
    %v497 = vpack.c.bf16 %v481, %v481
    %v498 = vpack.c.bf16 %v482, %v482
    %v499 = vpack.c.bf16 %v483, %v483
    %v500 = vpack.c.bf16 %v484, %v484
    %v501 = vpack.c.bf16 %v485, %v485
    %502 = vst [vmem:[%s6] sm:$0xf] %v486
    %503 = vst [vmem:[%s6 + $0x4] sm:$0xf] %v487
    %504 = vst [vmem:[%s6 + $0x8] sm:$0xf] %v488
    %505 = vst [vmem:[%s6 + $0xc] sm:$0xf] %v489
    %506 = vst [vmem:[%s6 + $0x10] sm:$0xf] %v490
    %507 = vst [vmem:[%s6 + $0x14] sm:$0xf] %v491
    %508 = vst [vmem:[%s6 + $0x18] sm:$0xf] %v492
    %509 = vst [vmem:[%s6 + $0x1c] sm:$0xf] %v493
    %510 = vst [vmem:[%s6 + $0x20] sm:$0xf] %v494
    %511 = vst [vmem:[%s6 + $0x24] sm:$0xf] %v495
    %512 = vst [vmem:[%s6 + $0x28] sm:$0xf] %v496
    %513 = vst [vmem:[%s6 + $0x2c] sm:$0xf] %v497
    %514 = vst [vmem:[%s6 + $0x30] sm:$0xf] %v498
    %515 = vst [vmem:[%s6 + $0x34] sm:$0xf] %v499
    %516 = vst [vmem:[%s6 + $0x38] sm:$0xf] %v500
    %517 = vst [vmem:[%s6 + $0x3c] sm:$0xf] %v501
    // Predicated region
    $region26: #{dual_path_block.2} parent=1 // pred_check
      _
    $region27: #{dual_path_block.2} parent=1 // pred_check_branch
      %519 = sbr.rel (0) target = $region29
    $region28: #{dual_path_block.2} parent=1 // pred_region
      _
    $region29: #{dual_path_block.2} parent=1 // pred_fallthru
      _
    // Predicated region
    $region30: #{dual_path_block.2} parent=1 // pred_check
      _
    $region31: #{dual_path_block.2} parent=1 // pred_check_branch
      %521 = sbr.rel (0) target = $region33
    $region32: #{dual_path_block.2} parent=1 // pred_region
      _
    $region33: #{dual_path_block.2} parent=1 // pred_fallthru
      _
    // Predicated region
    $region34: #{dual_path_block.2} parent=1 // pred_check
      _
    $region35: #{dual_path_block.2} parent=1 // pred_check_branch
      %523 = sbr.rel (0) target = $region37
    $region36: #{dual_path_block.2} parent=1 // pred_region
      _
    $region37: #{dual_path_block.2} parent=1 // pred_fallthru
      _
    // Predicated region
    $region38: #{dual_path_block.2} parent=1 // pred_check
      _
    $region39: #{dual_path_block.2} parent=1 // pred_check_branch
      %525 = sbr.rel (0) target = $region41
    $region40: #{dual_path_block.2} parent=1 // pred_region
      _
    $region41: #{dual_path_block.2} parent=1 // pred_fallthru
      _
    %526 = vsyncpa [#allocation3], 1

// kernel: dual_path_block.3
$region0: #{dual_path_block.3}
  #allocation0 [shape = 'u32[]', space=smem, size = 0x4, offset = 0x4, fixed_abs, tag = 'smem constant byte address 0x4 - core index']
  #allocation1 [shape = 'u32[72,128]{1,0:T(1,128)}', space=vmem, size = 0x9000, scoped, tag = 'internal scratch']
  #allocation2 [shape = 'bf16[10,10,128]{2,1,0:T(8,128)(2,1)}', space=vmem, size = 0xa000, scoped, tag = 'scratch operand']
  %s0 = inlined_call_operand.vmem [shape: bf16[2,8,8,128], index: 0, kind: input, shape index: {}]
  %s1 = inlined_call_operand.vmem [shape: bf16[2,8,8,128], index: 1, kind: input, shape index: {}]
  %s2 = inlined_call_operand.vmem [shape: f32[2,32], index: 2, kind: input, shape index: {}]
  %s3 = inlined_call_operand.vmem [shape: bf16[3,384,32], index: 3, kind: input, shape index: {}]
  %s4 = inlined_call_operand.vmem [shape: bf16[32,128], index: 4, kind: input, shape index: {}]
  %s5 = inlined_call_operand.vmem [shape: f32[2,8,8,128], index: 5, kind: output, shape index: {}]
  %s6 = sld [smem:[#allocation0]]
  $region53: #{dual_path_block.3} parent=0
    _
  %s8 = ssub.s32 1, %s6
  %s9 = scalar_select 0, %s8, %s6
  loop: start=0, step=1, limit=4
  $region2: #{dual_path_block.3} parent=0 // loop_pre_header
    _
  $region3: #{dual_path_block.3} parent=0 // loop_header
    %s11 = sphi 0, %s15
    %p12 = scmp.ge.s32.totalorder %s11, 4
    %s21 = sphi 0, %s23
    %s24 = sphi 0, %s21
    %s25 = sphi 0, %s24
    %s41 = sphi 0, %s25
    %s47 = sphi 0, %s49
    %s50 = sphi 0, %s47
    %s51 = sphi 0, %s50
    %s67 = sphi 0, %s51
    %s71 = sphi 0, %s71
    %s73 = sphi 0, %s71
    %s74 = sphi 0, %s73
    %s88 = sphi 0, %s74
    %s92 = sphi 0, %s92
    %s94 = sphi 0, %s92
    %s95 = sphi 0, %s94
    %s109 = sphi 0, %s95
    %s113 = sphi 0, %s113
    %s115 = sphi 0, %s113
    %s116 = sphi 0, %s115
    %s130 = sphi 0, %s116
    %s136 = sphi 0, %s138
    %s139 = sphi 0, %s136
    %s140 = sphi 0, %s139
    %s156 = sphi 0, %s140
  $region4: #{dual_path_block.3} parent=0 // loop_header_branch
    %14 = sbr.rel (%p12) target = $region8
  $region5: #{dual_path_block.3} parent=0 // loop_body
    %s16 = ssub.s32 %s11, 1
    %s17 = ssub.s32 %s11, 2
    %s18 = sadd.s32 %s11, 1
    %s19 = ssub.s32 %s11, %s18
    %p20 = scmp.eq.s32.totalorder %s19, 0
    %s22 = sadd.s32 %s21, 1
    %s23 = scalar_select %p20, %s21, %s22
    %p26 = pneg %p20
    %p27 = scmp.eq.s32.totalorder %s11, 1
    %p28 = por %p26, %p27
    %p29 = scmp.ne.s32.totalorder %s21, %s24
    %p30 = scmp.eq.s32.totalorder %s11, 0
    %p31 = por %p29, %p30
    %p32 = scmp.ne.s32.totalorder %s21, %s24
    %p33 = scmp.eq.s32.totalorder %s16, 1
    %p34 = por %p32, %p33
    %p35 = scmp.ne.s32.totalorder %s24, %s25
    %p36 = scmp.eq.s32.totalorder %s16, 0
    %p37 = por %p35, %p36
    %p38 = scmp.ne.s32.totalorder %s24, %s25
    %p39 = scmp.eq.s32.totalorder %s17, 1
    %p40 = por %p38, %p39
    %p42 = scmp.ne.s32.totalorder %s25, %s41
    %p43 = scmp.eq.s32.totalorder %s17, 0
    %p44 = por %p42, %p43
    %s45 = ssub.s32 %s11, %s18
    %p46 = scmp.eq.s32.totalorder %s45, 0
    %s48 = sadd.s32 %s47, 1
    %s49 = scalar_select %p46, %s47, %s48
    %p52 = pneg %p46
    %p53 = scmp.eq.s32.totalorder %s11, 1
    %p54 = por %p52, %p53
    %p55 = scmp.ne.s32.totalorder %s47, %s50
    %p56 = scmp.eq.s32.totalorder %s11, 0
    %p57 = por %p55, %p56
    %p58 = scmp.ne.s32.totalorder %s47, %s50
    %p59 = scmp.eq.s32.totalorder %s16, 1
    %p60 = por %p58, %p59
    %p61 = scmp.ne.s32.totalorder %s50, %s51
    %p62 = scmp.eq.s32.totalorder %s16, 0
    %p63 = por %p61, %p62
    %p64 = scmp.ne.s32.totalorder %s50, %s51
    %p65 = scmp.eq.s32.totalorder %s17, 1
    %p66 = por %p64, %p65
    %p68 = scmp.ne.s32.totalorder %s51, %s67
    %p69 = scmp.eq.s32.totalorder %s17, 0
    %p70 = por %p68, %p69
    %s72 = sadd.s32 %s71, 1
    %p75 = scmp.eq.s32.totalorder %s11, 1
    %p76 = scmp.ne.s32.totalorder %s71, %s73
    %p77 = scmp.eq.s32.totalorder %s11, 0
    %p78 = por %p76, %p77
    %p79 = scmp.ne.s32.totalorder %s71, %s73
    %p80 = scmp.eq.s32.totalorder %s16, 1
    %p81 = por %p79, %p80
    %p82 = scmp.ne.s32.totalorder %s73, %s74
    %p83 = scmp.eq.s32.totalorder %s16, 0
    %p84 = por %p82, %p83
    %p85 = scmp.ne.s32.totalorder %s73, %s74
    %p86 = scmp.eq.s32.totalorder %s17, 1
    %p87 = por %p85, %p86
    %p89 = scmp.ne.s32.totalorder %s74, %s88
    %p90 = scmp.eq.s32.totalorder %s17, 0
    %p91 = por %p89, %p90
    %s93 = sadd.s32 %s92, 1
    %p96 = scmp.eq.s32.totalorder %s11, 1
    %p97 = scmp.ne.s32.totalorder %s92, %s94
    %p98 = scmp.eq.s32.totalorder %s11, 0
    %p99 = por %p97, %p98
    %p100 = scmp.ne.s32.totalorder %s92, %s94
    %p101 = scmp.eq.s32.totalorder %s16, 1
    %p102 = por %p100, %p101
    %p103 = scmp.ne.s32.totalorder %s94, %s95
    %p104 = scmp.eq.s32.totalorder %s16, 0
    %p105 = por %p103, %p104
    %p106 = scmp.ne.s32.totalorder %s94, %s95
    %p107 = scmp.eq.s32.totalorder %s17, 1
    %p108 = por %p106, %p107
    %p110 = scmp.ne.s32.totalorder %s95, %s109
    %p111 = scmp.eq.s32.totalorder %s17, 0
    %p112 = por %p110, %p111
    %s114 = sadd.s32 %s113, 1
    %p117 = scmp.eq.s32.totalorder %s11, 1
    %p118 = scmp.ne.s32.totalorder %s113, %s115
    %p119 = scmp.eq.s32.totalorder %s11, 0
    %p120 = por %p118, %p119
    %p121 = scmp.ne.s32.totalorder %s113, %s115
    %p122 = scmp.eq.s32.totalorder %s16, 1
    %p123 = por %p121, %p122
    %p124 = scmp.ne.s32.totalorder %s115, %s116
    %p125 = scmp.eq.s32.totalorder %s16, 0
    %p126 = por %p124, %p125
    %p127 = scmp.ne.s32.totalorder %s115, %s116
    %p128 = scmp.eq.s32.totalorder %s17, 1
    %p129 = por %p127, %p128
    %p131 = scmp.ne.s32.totalorder %s116, %s130
    %p132 = scmp.eq.s32.totalorder %s17, 0
    %p133 = por %p131, %p132
    %s134 = ssub.s32 %s11, %s18
    %p135 = scmp.eq.s32.totalorder %s134, 0
    %s137 = sadd.s32 %s136, 1
    %s138 = scalar_select %p135, %s136, %s137
    %p141 = pneg %p135
    %p142 = scmp.eq.s32.totalorder %s11, 1
    %p143 = por %p141, %p142
    %p144 = scmp.ne.s32.totalorder %s136, %s139
    %p145 = scmp.eq.s32.totalorder %s11, 0
    %p146 = por %p144, %p145
    %p147 = scmp.ne.s32.totalorder %s136, %s139
    %p148 = scmp.eq.s32.totalorder %s16, 1
    %p149 = por %p147, %p148
    %p150 = scmp.ne.s32.totalorder %s139, %s140
    %p151 = scmp.eq.s32.totalorder %s16, 0
    %p152 = por %p150, %p151
    %p153 = scmp.ne.s32.totalorder %s139, %s140
    %p154 = scmp.eq.s32.totalorder %s17, 1
    %p155 = por %p153, %p154
    %p157 = scmp.ne.s32.totalorder %s140, %s156
    %p158 = scmp.eq.s32.totalorder %s17, 0
    %p159 = por %p157, %p158
    %p160 = scmp.le.s32.totalorder 1, %s11
    %p161 = scmp.lt.s32.totalorder %s11, 3
    %p162 = pnand %p160, %p161
    %p163 = pneg %p162
    // Predicated region
    $region9: #{dual_path_block.3} parent=5 // pred_check
      _
    $region10: #{dual_path_block.3} parent=5 // pred_check_branch
      %165 = sbr.rel (%p162) target = $region12
    $region11: #{dual_path_block.3} parent=5 // pred_region
      %s166 = ssub.s32 %s11, 1
      // Predicated region
      $region13: #{dual_path_block.3} parent=11 // pred_check
        %p167 = pneg %p84
      $region14: #{dual_path_block.3} parent=11 // pred_check_branch
        %169 = sbr.rel (%p167) target = $region16
      $region15: #{dual_path_block.3} parent=11 // pred_region
        _
      $region16: #{dual_path_block.3} parent=11 // pred_fallthru
        _
      // Predicated region
      $region17: #{dual_path_block.3} parent=11 // pred_check
        %p170 = pneg %p105
      $region18: #{dual_path_block.3} parent=11 // pred_check_branch
        %172 = sbr.rel (%p170) target = $region20
      $region19: #{dual_path_block.3} parent=11 // pred_region
        _
      $region20: #{dual_path_block.3} parent=11 // pred_fallthru
        _
      // Predicated region
      $region21: #{dual_path_block.3} parent=11 // pred_check
        %p173 = pneg %p126
      $region22: #{dual_path_block.3} parent=11 // pred_check_branch
        %175 = sbr.rel (%p173) target = $region24
      $region23: #{dual_path_block.3} parent=11 // pred_region
        _
      $region24: #{dual_path_block.3} parent=11 // pred_fallthru
        _
    $region12: #{dual_path_block.3} parent=5 // pred_fallthru
      _
    %p176 = scmp.lt.s32.totalorder %s11, 2
    // Predicated region
    $region25: #{dual_path_block.3} parent=5 // pred_check
      %p177 = pneg %p176
    $region26: #{dual_path_block.3} parent=5 // pred_check_branch
      %179 = sbr.rel (%p177) target = $region28
    $region27: #{dual_path_block.3} parent=5 // pred_region
      // Predicated region
      $region29: #{dual_path_block.3} parent=27 // pred_check
        %p180 = pneg %p31
      $region30: #{dual_path_block.3} parent=27 // pred_check_branch
        %182 = sbr.rel (%p180) target = $region32
      $region31: #{dual_path_block.3} parent=27 // pred_region
        %p183 = scmp.lt.s32.totalorder %s11, 1
        %s184 = scalar_select %p183, %s11, 1
        %s185 = smul.addr %s184, 8
        %s186 = smul.addr %s185, 4
        %s187 = scalar_lea.vmem %s0, %s186
      $region32: #{dual_path_block.3} parent=27 // pred_fallthru
        _
      // Predicated region
      $region33: #{dual_path_block.3} parent=27 // pred_check
        %p188 = pneg %p57
      $region34: #{dual_path_block.3} parent=27 // pred_check_branch
        %190 = sbr.rel (%p188) target = $region36
      $region35: #{dual_path_block.3} parent=27 // pred_region
        %p191 = scmp.lt.s32.totalorder %s11, 1
        %s192 = scalar_select %p191, %s11, 1
        %s193 = smul.addr %s192, 8
        %s194 = smul.addr %s193, 4
        %s195 = scalar_lea.vmem %s1, %s194
      $region36: #{dual_path_block.3} parent=27 // pred_fallthru
        _
    $region28: #{dual_path_block.3} parent=5 // pred_fallthru
      _
    %p196 = scmp.le.s32.totalorder 1, %s11
    %p197 = scmp.lt.s32.totalorder %s11, 3
    %p198 = pnand %p196, %p197
    %p199 = pneg %p198
    // Predicated region
    $region37: #{dual_path_block.3} parent=5 // pred_check
      _
    $region38: #{dual_path_block.3} parent=5 // pred_check_branch
      %201 = sbr.rel (%p198) target = $region40
    $region39: #{dual_path_block.3} parent=5 // pred_region
      %s202 = ssub.s32 %s11, 1
      %p203 = scmp.lt.s32.totalorder %s16, 1
      %s204 = scalar_select %p203, %s16, 1
      %s205 = smul.addr %s204, 8
      %s206 = smul.addr %s205, 4
      %s207 = scalar_lea.vmem %s0, %s206
      %p208 = pneg %p37
      %p209 = pneg %p34
      %p210 = scmp.lt.s32.totalorder %s16, 1
      %s211 = scalar_select %p210, %s16, 1
      %s212 = smul.addr %s211, 8
      %s213 = smul.addr %s212, 4
      %s214 = scalar_lea.vmem %s1, %s213
      %p215 = pneg %p63
      %p216 = pneg %p60
      %p217 = pneg %p84
      %p218 = pneg %p81
      %p219 = pneg %p105
      %p220 = pneg %p102
      %p221 = pneg %p126
      %p222 = pneg %p123
      %p223 = pneg %p152
      %p224 = pneg %p149
      %p225 = scmp.lt.s32.totalorder %s16, 1
      %s226 = scalar_select %p225, %s16, 1
      %s227 = smul.addr %s226, 8
      %s228 = smul.addr %s227, 8
      %s229 = scalar_lea.vmem %s5, %s228
      %p230 = scmp.lt.s32.totalorder %s16, 1
      %s231 = scalar_select %p230, %s16, 1
      %s232 = smul.addr %s231, 8
      %s233 = smul.addr %s232, 4
      %s234 = scalar_lea.vmem %s0, %s233
      %p235 = scmp.lt.s32.totalorder %s16, 1
      %s236 = scalar_select %p235, %s16, 1
      %s237 = smul.addr %s236, 8
      %s238 = smul.addr %s237, 4
      %s239 = scalar_lea.vmem %s1, %s238
      %p240 = scmp.lt.s32.totalorder %s16, 1
      %s241 = scalar_select %p240, %s16, 1
      %s242 = smul.addr %s241, 8
      %s243 = smul.addr %s242, 8
      %s244 = scalar_lea.vmem %s5, %s243
      %246 = vst [vmem:[#allocation2] sm:$0xf] 0
      %247 = vst [vmem:[#allocation2 + $0x4] sm:$0x1] 0
      %248 = vst [vmem:[#allocation2 + $0x8] sm:$0xf] 0
      %249 = vst [vmem:[#allocation2 + $0xc] sm:$0x1] 0
      %250 = vst [vmem:[#allocation2 + $0x10] sm:$0xf] 0
      %251 = vst [vmem:[#allocation2 + $0x14] sm:$0x1] 0
      %252 = vst [vmem:[#allocation2 + $0x18] sm:$0xf] 0
      %253 = vst [vmem:[#allocation2 + $0x1c] sm:$0x1] 0
      %254 = vst [vmem:[#allocation2 + $0x20] sm:$0xf] 0
      %255 = vst [vmem:[#allocation2 + $0x24] sm:$0x1] 0
      %256 = vst [vmem:[#allocation2 + $0x28] sm:$0xf] 0
      %257 = vst [vmem:[#allocation2 + $0x2c] sm:$0x1] 0
      %258 = vst [vmem:[#allocation2 + $0x30] sm:$0xf] 0
      %259 = vst [vmem:[#allocation2 + $0x34] sm:$0x1] 0
      %260 = vst [vmem:[#allocation2 + $0x38] sm:$0xf] 0
      %261 = vst [vmem:[#allocation2 + $0x3c] sm:$0x1] 0
      %262 = vst [vmem:[#allocation2 + $0x40] sm:$0xf] 0
      %263 = vst [vmem:[#allocation2 + $0x44] sm:$0x1] 0
      %264 = vst [vmem:[#allocation2 + $0x48] sm:$0xf] 0
      %265 = vst [vmem:[#allocation2 + $0x4c] sm:$0x1] 0
      %v266 = vld [vmem:[%s234] sm:$0xf]
      %v267 = vld [vmem:[%s234 + $0x4] sm:$0xf]
      %v268 = vld [vmem:[%s234 + $0x8] sm:$0xf]
      %v269 = vld [vmem:[%s234 + $0xc] sm:$0xf]
      %v270 = vld [vmem:[%s234 + $0x10] sm:$0xf]
      %v271 = vld [vmem:[%s234 + $0x14] sm:$0xf]
      %v272 = vld [vmem:[%s234 + $0x18] sm:$0xf]
      %v273 = vld [vmem:[%s234 + $0x1c] sm:$0xf]
      %v275 = vshrl.u32 %v266, 16
      %v277 = vrot.slane %v275, 7
      %v278 = vshll.u32 %v266, 16
      %v280 = vor.u32 %v277, %v278
      %v281 = vrot.slane %v277, 4
      %v283 = vshrl.u32 %v267, 16
      %v285 = vrot.slane %v283, 7
      %v286 = vshll.u32 %v267, 16
      %v288 = vor.u32 %v285, %v286
      %v289 = vrot.slane %v285, 4
      %v291 = vshrl.u32 %v268, 16
      %v293 = vrot.slane %v291, 7
      %v294 = vshll.u32 %v268, 16
      %v296 = vor.u32 %v293, %v294
      %v297 = vrot.slane %v293, 4
      %v299 = vshrl.u32 %v269, 16
      %v301 = vrot.slane %v299, 7
      %v302 = vshll.u32 %v269, 16
      %v304 = vor.u32 %v301, %v302
      %v305 = vrot.slane %v301, 4
      %v307 = vshrl.u32 %v270, 16
      %v309 = vrot.slane %v307, 7
      %v310 = vshll.u32 %v270, 16
      %v312 = vor.u32 %v309, %v310
      %v313 = vrot.slane %v309, 4
      %v315 = vshrl.u32 %v271, 16
      %v317 = vrot.slane %v315, 7
      %v318 = vshll.u32 %v271, 16
      %v320 = vor.u32 %v317, %v318
      %v321 = vrot.slane %v317, 4
      %v323 = vshrl.u32 %v272, 16
      %v325 = vrot.slane %v323, 7
      %v326 = vshll.u32 %v272, 16
      %v328 = vor.u32 %v325, %v326
      %v329 = vrot.slane %v325, 4
      %v331 = vshrl.u32 %v273, 16
      %v333 = vrot.slane %v331, 7
      %v334 = vshll.u32 %v273, 16
      %v336 = vor.u32 %v333, %v334
      %v337 = vrot.slane %v333, 4
      %s354 = scalar_lea.vmem [#allocation2], 8
      %vm355 = vcmask 1043456
      %vm356 = vsmask.f32 7938
      %vm357 = vmand %vm355, %vm356
      %v358 = vld [vmem:[%s354] sm:$0xf]
      %v359 = vsel %vm357, %v280, %v358
      %360 = vst [vmem:[%s354] sm:$0xf] %v359
      %vm361 = vcmask 1040384
      %vm362 = vsmask.f32 256
      %vm363 = vmand %vm361, %vm362
      %v364 = vld [vmem:[%s354 + $0x4] sm:$0x1]
      %v365 = vsel %vm363, %v281, %v364
      %366 = vst [vmem:[%s354 + $0x4] sm:$0x1] %v365
      %v367 = vld [vmem:[%s354 + $0x8] sm:$0xf]
      %v368 = vsel %vm357, %v288, %v367
      %369 = vst [vmem:[%s354 + $0x8] sm:$0xf] %v368
      %v370 = vld [vmem:[%s354 + $0xc] sm:$0x1]
      %v371 = vsel %vm363, %v289, %v370
      %372 = vst [vmem:[%s354 + $0xc] sm:$0x1] %v371
      %v373 = vld [vmem:[%s354 + $0x10] sm:$0xf]
      %v374 = vsel %vm357, %v296, %v373
      %375 = vst [vmem:[%s354 + $0x10] sm:$0xf] %v374
      %v376 = vld [vmem:[%s354 + $0x14] sm:$0x1]
      %v377 = vsel %vm363, %v297, %v376
      %378 = vst [vmem:[%s354 + $0x14] sm:$0x1] %v377
      %v379 = vld [vmem:[%s354 + $0x18] sm:$0xf]
      %v380 = vsel %vm357, %v304, %v379
      %381 = vst [vmem:[%s354 + $0x18] sm:$0xf] %v380
      %v382 = vld [vmem:[%s354 + $0x1c] sm:$0x1]
      %v383 = vsel %vm363, %v305, %v382
      %384 = vst [vmem:[%s354 + $0x1c] sm:$0x1] %v383
      %v385 = vld [vmem:[%s354 + $0x20] sm:$0xf]
      %v386 = vsel %vm357, %v312, %v385
      %387 = vst [vmem:[%s354 + $0x20] sm:$0xf] %v386
      %v388 = vld [vmem:[%s354 + $0x24] sm:$0x1]
      %v389 = vsel %vm363, %v313, %v388
      %390 = vst [vmem:[%s354 + $0x24] sm:$0x1] %v389
      %v391 = vld [vmem:[%s354 + $0x28] sm:$0xf]
      %v392 = vsel %vm357, %v320, %v391
      %393 = vst [vmem:[%s354 + $0x28] sm:$0xf] %v392
      %v394 = vld [vmem:[%s354 + $0x2c] sm:$0x1]
      %v395 = vsel %vm363, %v321, %v394
      %396 = vst [vmem:[%s354 + $0x2c] sm:$0x1] %v395
      %v397 = vld [vmem:[%s354 + $0x30] sm:$0xf]
      %v398 = vsel %vm357, %v328, %v397
      %399 = vst [vmem:[%s354 + $0x30] sm:$0xf] %v398
      %v400 = vld [vmem:[%s354 + $0x34] sm:$0x1]
      %v401 = vsel %vm363, %v329, %v400
      %402 = vst [vmem:[%s354 + $0x34] sm:$0x1] %v401
      %v403 = vld [vmem:[%s354 + $0x38] sm:$0xf]
      %v404 = vsel %vm357, %v336, %v403
      %405 = vst [vmem:[%s354 + $0x38] sm:$0xf] %v404
      %v406 = vld [vmem:[%s354 + $0x3c] sm:$0x1]
      %v407 = vsel %vm363, %v337, %v406
      %408 = vst [vmem:[%s354 + $0x3c] sm:$0x1] %v407
      %v409 = vld [vmem:[#allocation2] sm:$0xf]
      %v410 = vld [vmem:[#allocation2 + $0x4] sm:$0x1]
      %v411 = vld [vmem:[#allocation2 + $0x8] sm:$0xf]
      %v412 = vld [vmem:[#allocation2 + $0xc] sm:$0x1]
      %v413 = vld [vmem:[#allocation2 + $0x10] sm:$0xf]
      %v414 = vld [vmem:[#allocation2 + $0x14] sm:$0x1]
      %v415 = vld [vmem:[#allocation2 + $0x18] sm:$0xf]
      %v416 = vld [vmem:[#allocation2 + $0x1c] sm:$0x1]
      %v417 = vld [vmem:[#allocation2 + $0x20] sm:$0xf]
      %v418 = vld [vmem:[#allocation2 + $0x24] sm:$0x1]
      %v419 = vld [vmem:[#allocation2 + $0x28] sm:$0xf]
      %v420 = vld [vmem:[#allocation2 + $0x2c] sm:$0x1]
      %v421 = vld [vmem:[#allocation2 + $0x30] sm:$0xf]
      %v422 = vld [vmem:[#allocation2 + $0x34] sm:$0x1]
      %v423 = vld [vmem:[#allocation2 + $0x38] sm:$0xf]
      %v424 = vld [vmem:[#allocation2 + $0x3c] sm:$0x1]
      %v425 = vld [vmem:[#allocation2 + $0x40] sm:$0xf]
      %v426 = vld [vmem:[#allocation2 + $0x44] sm:$0x1]
      %v427 = vld [vmem:[#allocation2 + $0x48] sm:$0xf]
      %v428 = vld [vmem:[#allocation2 + $0x4c] sm:$0x1]
      %v445 = vunpack.c.l.b16 %v409
      %v446 = vunpack.c.l.b16 %v410
      %v447 = vunpack.c.l.b16 %v411
      %v448 = vunpack.c.l.b16 %v412
      %v449 = vunpack.c.l.b16 %v413
      %v450 = vunpack.c.l.b16 %v414
      %v451 = vunpack.c.l.b16 %v415
      %v452 = vunpack.c.l.b16 %v416
      %v453 = vunpack.c.l.b16 %v417
      %v454 = vunpack.c.l.b16 %v418
      %v455 = vunpack.c.l.b16 %v419
      %v456 = vunpack.c.l.b16 %v420
      %v457 = vunpack.c.l.b16 %v421
      %v458 = vunpack.c.l.b16 %v422
      %v459 = vunpack.c.l.b16 %v423
      %v460 = vunpack.c.l.b16 %v424
      %v461 = vpack.c.b16 %v446, %v445
      %v462 = vpack.c.b16 %v448, %v447
      %v463 = vpack.c.b16 %v450, %v449
      %v464 = vpack.c.b16 %v452, %v451
      %v465 = vpack.c.b16 %v454, %v453
      %v466 = vpack.c.b16 %v456, %v455
      %v467 = vpack.c.b16 %v458, %v457
      %v468 = vpack.c.b16 %v460, %v459
      %v470 = vshrl.u32 %v461, 16
      %v472 = vshll.u32 %v461, 16
      %v474 = vrot.slane %v472, 1
      %v475 = vor.u32 %v470, %v474
      %v477 = vshrl.u32 %v462, 16
      %v479 = vshll.u32 %v462, 16
      %v481 = vrot.slane %v479, 1
      %v482 = vor.u32 %v477, %v481
      %v484 = vshrl.u32 %v463, 16
      %v486 = vshll.u32 %v463, 16
      %v488 = vrot.slane %v486, 1
      %v489 = vor.u32 %v484, %v488
      %v491 = vshrl.u32 %v464, 16
      %v493 = vshll.u32 %v464, 16
      %v495 = vrot.slane %v493, 1
      %v496 = vor.u32 %v491, %v495
      %v498 = vshrl.u32 %v465, 16
      %v500 = vshll.u32 %v465, 16
      %v502 = vrot.slane %v500, 1
      %v503 = vor.u32 %v498, %v502
      %v505 = vshrl.u32 %v466, 16
      %v507 = vshll.u32 %v466, 16
      %v509 = vrot.slane %v507, 1
      %v510 = vor.u32 %v505, %v509
      %v512 = vshrl.u32 %v467, 16
      %v514 = vshll.u32 %v467, 16
      %v516 = vrot.slane %v514, 1
      %v517 = vor.u32 %v512, %v516
      %v519 = vshrl.u32 %v468, 16
      %v521 = vshll.u32 %v468, 16
      %v523 = vrot.slane %v521, 1
      %v524 = vor.u32 %v519, %v523
      %v525 = vrot.slane %v461, 1
      %v526 = vrot.slane %v462, 1
      %v527 = vrot.slane %v463, 1
      %v528 = vrot.slane %v464, 1
      %v529 = vrot.slane %v465, 1
      %v530 = vrot.slane %v466, 1
      %v531 = vrot.slane %v467, 1
      %v532 = vrot.slane %v468, 1
      %v533 = vunpack.c.l.b16 %v475
      %v534 = vunpack.c.l.b16 %v525
      %v535 = vunpack.c.l.b16 %v482
      %v536 = vunpack.c.l.b16 %v526
      %v537 = vunpack.c.l.b16 %v489
      %v538 = vunpack.c.l.b16 %v527
      %v539 = vunpack.c.l.b16 %v496
      %v540 = vunpack.c.l.b16 %v528
      %v541 = vunpack.c.l.b16 %v503
      %v542 = vunpack.c.l.b16 %v529
      %v543 = vunpack.c.l.b16 %v510
      %v544 = vunpack.c.l.b16 %v530
      %v545 = vunpack.c.l.b16 %v517
      %v546 = vunpack.c.l.b16 %v531
      %v547 = vunpack.c.l.b16 %v524
      %v548 = vunpack.c.l.b16 %v532
      %v549 = vld [vmem:[%s3] sm:$0xf]
      %v550 = vld [vmem:[%s3 + $0x4] sm:$0xf]
      %v551 = vld [vmem:[%s3 + $0x8] sm:$0xf]
      %v552 = vld [vmem:[%s3 + $0xc] sm:$0xf]
      %v553 = vld [vmem:[%s3 + $0x10] sm:$0xf]
      %v554 = vld [vmem:[%s3 + $0x14] sm:$0xf]
      %v555 = vld [vmem:[%s3 + $0x18] sm:$0xf]
      %v556 = vld [vmem:[%s3 + $0x1c] sm:$0xf]
      %v557 = vld [vmem:[%s3 + $0x20] sm:$0xf]
      %v558 = vld [vmem:[%s3 + $0x24] sm:$0xf]
      %v559 = vld [vmem:[%s3 + $0x28] sm:$0xf]
      %v560 = vld [vmem:[%s3 + $0x2c] sm:$0xf]
      %v561 = vld [vmem:[%s3 + $0x30] sm:$0xf]
      %v562 = vld [vmem:[%s3 + $0x34] sm:$0xf]
      %v563 = vld [vmem:[%s3 + $0x38] sm:$0xf]
      %v564 = vld [vmem:[%s3 + $0x3c] sm:$0xf]
      %v565 = vld [vmem:[%s3 + $0x40] sm:$0xf]
      %v566 = vld [vmem:[%s3 + $0x44] sm:$0xf]
      %v567 = vld [vmem:[%s3 + $0x48] sm:$0xf]
      %v568 = vld [vmem:[%s3 + $0x4c] sm:$0xf]
      %v569 = vld [vmem:[%s3 + $0x50] sm:$0xf]
      %v570 = vld [vmem:[%s3 + $0x54] sm:$0xf]
      %v571 = vld [vmem:[%s3 + $0x58] sm:$0xf]
      %v572 = vld [vmem:[%s3 + $0x5c] sm:$0xf]
      %v573 = vld [vmem:[%s3 + $0x60] sm:$0xf]
      %v574 = vld [vmem:[%s3 + $0x64] sm:$0xf]
      %v575 = vld [vmem:[%s3 + $0x68] sm:$0xf]
      %v576 = vld [vmem:[%s3 + $0x6c] sm:$0xf]
      %v577 = vld [vmem:[%s3 + $0x70] sm:$0xf]
      %v578 = vld [vmem:[%s3 + $0x74] sm:$0xf]
      %v579 = vld [vmem:[%s3 + $0x78] sm:$0xf]
      %v580 = vld [vmem:[%s3 + $0x7c] sm:$0xf]
      %v581 = vld [vmem:[%s3 + $0x80] sm:$0xf]
      %v582 = vld [vmem:[%s3 + $0x84] sm:$0xf]
      %v583 = vld [vmem:[%s3 + $0x88] sm:$0xf]
      %v584 = vld [vmem:[%s3 + $0x8c] sm:$0xf]
      %v585 = vld [vmem:[%s3 + $0x90] sm:$0xf]
      %v586 = vld [vmem:[%s3 + $0x94] sm:$0xf]
      %v587 = vld [vmem:[%s3 + $0x98] sm:$0xf]
      %v588 = vld [vmem:[%s3 + $0x9c] sm:$0xf]
      %v589 = vld [vmem:[%s3 + $0xa0] sm:$0xf]
      %v590 = vld [vmem:[%s3 + $0xa4] sm:$0xf]
      %v591 = vld [vmem:[%s3 + $0xa8] sm:$0xf]
      %v592 = vld [vmem:[%s3 + $0xac] sm:$0xf]
      %v593 = vld [vmem:[%s3 + $0xb0] sm:$0xf]
      %v594 = vld [vmem:[%s3 + $0xb4] sm:$0xf]
      %v595 = vld [vmem:[%s3 + $0xb8] sm:$0xf]
      %v596 = vld [vmem:[%s3 + $0xbc] sm:$0xf]
      %v599 = vunpack.c.l.b16 %v425
      %v600 = vunpack.c.l.b16 %v426
      %v601 = vpack.c.b16 %v600, %v599
      %v603 = vshrl.u32 %v601, 16
      %v605 = vshll.u32 %v601, 16
      %v607 = vrot.slane %v605, 1
      %v608 = vor.u32 %v603, %v607
      %v609 = vrot.slane %v601, 1
      %v610 = vunpack.c.l.b16 %v608
      %v611 = vunpack.c.l.b16 %v609
      %s612 = scalar_lea.vmem %s3, 192
      %v613 = vld [vmem:[%s612] sm:$0xf]
      %v614 = vld [vmem:[%s612 + $0x4] sm:$0xf]
      %v615 = vld [vmem:[%s612 + $0x8] sm:$0xf]
      %v616 = vld [vmem:[%s612 + $0xc] sm:$0xf]
      %v617 = vld [vmem:[%s612 + $0x10] sm:$0xf]
      %v618 = vld [vmem:[%s612 + $0x14] sm:$0xf]
      %v619 = vld [vmem:[%s612 + $0x18] sm:$0xf]
      %v620 = vld [vmem:[%s612 + $0x1c] sm:$0xf]
      %v621 = vld [vmem:[%s612 + $0x20] sm:$0xf]
      %v622 = vld [vmem:[%s612 + $0x24] sm:$0xf]
      %v623 = vld [vmem:[%s612 + $0x28] sm:$0xf]
      %v624 = vld [vmem:[%s612 + $0x2c] sm:$0xf]
      %v625 = vld [vmem:[%s612 + $0x30] sm:$0xf]
      %v626 = vld [vmem:[%s612 + $0x34] sm:$0xf]
      %v627 = vld [vmem:[%s612 + $0x38] sm:$0xf]
      %v628 = vld [vmem:[%s612 + $0x3c] sm:$0xf]
      %v629 = vld [vmem:[%s612 + $0x40] sm:$0xf]
      %v630 = vld [vmem:[%s612 + $0x44] sm:$0xf]
      %v631 = vld [vmem:[%s612 + $0x48] sm:$0xf]
      %v632 = vld [vmem:[%s612 + $0x4c] sm:$0xf]
      %v633 = vld [vmem:[%s612 + $0x50] sm:$0xf]
      %v634 = vld [vmem:[%s612 + $0x54] sm:$0xf]
      %v635 = vld [vmem:[%s612 + $0x58] sm:$0xf]
      %v636 = vld [vmem:[%s612 + $0x5c] sm:$0xf]
      %v637 = vld [vmem:[%s612 + $0x60] sm:$0xf]
      %v638 = vld [vmem:[%s612 + $0x64] sm:$0xf]
      %v639 = vld [vmem:[%s612 + $0x68] sm:$0xf]
      %v640 = vld [vmem:[%s612 + $0x6c] sm:$0xf]
      %v641 = vld [vmem:[%s612 + $0x70] sm:$0xf]
      %v642 = vld [vmem:[%s612 + $0x74] sm:$0xf]
      %v643 = vld [vmem:[%s612 + $0x78] sm:$0xf]
      %v644 = vld [vmem:[%s612 + $0x7c] sm:$0xf]
      %v645 = vld [vmem:[%s612 + $0x80] sm:$0xf]
      %v646 = vld [vmem:[%s612 + $0x84] sm:$0xf]
      %v647 = vld [vmem:[%s612 + $0x88] sm:$0xf]
      %v648 = vld [vmem:[%s612 + $0x8c] sm:$0xf]
      %v649 = vld [vmem:[%s612 + $0x90] sm:$0xf]
      %v650 = vld [vmem:[%s612 + $0x94] sm:$0xf]
      %v651 = vld [vmem:[%s612 + $0x98] sm:$0xf]
      %v652 = vld [vmem:[%s612 + $0x9c] sm:$0xf]
      %v653 = vld [vmem:[%s612 + $0xa0] sm:$0xf]
      %v654 = vld [vmem:[%s612 + $0xa4] sm:$0xf]
      %v655 = vld [vmem:[%s612 + $0xa8] sm:$0xf]
      %v656 = vld [vmem:[%s612 + $0xac] sm:$0xf]
      %v657 = vld [vmem:[%s612 + $0xb0] sm:$0xf]
      %v658 = vld [vmem:[%s612 + $0xb4] sm:$0xf]
      %v659 = vld [vmem:[%s612 + $0xb8] sm:$0xf]
      %v660 = vld [vmem:[%s612 + $0xbc] sm:$0xf]
      %v661 = vpack.c.b16 %v449, %v447
      %v662 = vpack.c.b16 %v537, %v535
      %v663 = vpack.c.b16 %v538, %v536
      %v664 = vpack.c.b16 %v453, %v451
      %v665 = vpack.c.b16 %v541, %v539
      %v666 = vpack.c.b16 %v542, %v540
      %v667 = vpack.c.b16 %v457, %v455
      %v668 = vpack.c.b16 %v545, %v543
      %v669 = vpack.c.b16 %v546, %v544
      %v670 = vpack.c.b16 %v599, %v459
      %v671 = vpack.c.b16 %v610, %v547
      %v672 = vpack.c.b16 %v611, %v548
      %v733 = vunpack.c.l.b16 %v613
      %v734 = vunpack.c.l.b16 %v614
      %v735 = vunpack.c.l.b16 %v615
      %v736 = vunpack.c.l.b16 %v616
      %v737 = vunpack.c.l.b16 %v617
      %v738 = vunpack.c.l.b16 %v618
      %v739 = vunpack.c.l.b16 %v619
      %v740 = vunpack.c.l.b16 %v620
      %v741 = vunpack.c.l.b16 %v621
      %v742 = vunpack.c.l.b16 %v622
      %v743 = vunpack.c.l.b16 %v623
      %v744 = vunpack.c.l.b16 %v624
      %v745 = vunpack.c.l.b16 %v625
      %v746 = vunpack.c.l.b16 %v626
      %v747 = vunpack.c.l.b16 %v627
      %v748 = vunpack.c.l.b16 %v628
      %v749 = vunpack.c.l.b16 %v629
      %v750 = vunpack.c.l.b16 %v630
      %v751 = vunpack.c.l.b16 %v631
      %v752 = vunpack.c.l.b16 %v632
      %v753 = vunpack.c.l.b16 %v633
      %v754 = vunpack.c.l.b16 %v634
      %v755 = vunpack.c.l.b16 %v635
      %v756 = vunpack.c.l.b16 %v636
      %v757 = vunpack.c.l.b16 %v637
      %v758 = vunpack.c.l.b16 %v638
      %v759 = vunpack.c.l.b16 %v639
      %v760 = vunpack.c.l.b16 %v640
      %v761 = vunpack.c.l.b16 %v641
      %v762 = vunpack.c.l.b16 %v642
      %v763 = vunpack.c.l.b16 %v643
      %v764 = vunpack.c.l.b16 %v644
      %v765 = vunpack.c.l.b16 %v645
      %v766 = vunpack.c.l.b16 %v646
      %v767 = vunpack.c.l.b16 %v647
      %v768 = vunpack.c.l.b16 %v648
      %v769 = vunpack.c.l.b16 %v649
      %v770 = vunpack.c.l.b16 %v650
      %v771 = vunpack.c.l.b16 %v651
      %v772 = vunpack.c.l.b16 %v652
      %v773 = vunpack.c.l.b16 %v653
      %v774 = vunpack.c.l.b16 %v654
      %v775 = vunpack.c.l.b16 %v655
      %v776 = vunpack.c.l.b16 %v656
      %v777 = vunpack.c.l.b16 %v657
      %v778 = vunpack.c.l.b16 %v658
      %v779 = vunpack.c.l.b16 %v659
      %v780 = vunpack.c.l.b16 %v660
      %v781 = vpack.c.b16 %v734, %v733
      %v782 = vpack.c.b16 %v736, %v735
      %v783 = vpack.c.b16 %v738, %v737
      %v784 = vpack.c.b16 %v740, %v739
      %v785 = vpack.c.b16 %v742, %v741
      %v786 = vpack.c.b16 %v744, %v743
      %v787 = vpack.c.b16 %v746, %v745
      %v788 = vpack.c.b16 %v748, %v747
      %v789 = vpack.c.b16 %v750, %v749
      %v790 = vpack.c.b16 %v752, %v751
      %v791 = vpack.c.b16 %v754, %v753
      %v792 = vpack.c.b16 %v756, %v755
      %v793 = vpack.c.b16 %v758, %v757
      %v794 = vpack.c.b16 %v760, %v759
      %v795 = vpack.c.b16 %v762, %v761
      %v796 = vpack.c.b16 %v764, %v763
      %v797 = vpack.c.b16 %v766, %v765
      %v798 = vpack.c.b16 %v768, %v767
      %v799 = vpack.c.b16 %v770, %v769
      %v800 = vpack.c.b16 %v772, %v771
      %v801 = vpack.c.b16 %v774, %v773
      %v802 = vpack.c.b16 %v776, %v775
      %v803 = vpack.c.b16 %v778, %v777
      %v804 = vpack.c.b16 %v780, %v779
      %829 = vmatpush.bf16.msra.mxu0 %v788
      %830 = vmatpush.bf16.msra.mxu0 %v787
      %831 = vmatpush.bf16.msra.mxu0 %v786
      %832 = vmatpush.bf16.msra.mxu0 %v785
      %833 = vmatpush.bf16.msra.mxu0 %v784
      %834 = vmatpush.bf16.msra.mxu0 %v783
      %835 = vmatpush.bf16.msra.mxu0 %v782
      %836 = vmatpush.bf16.msra.mxu0 %v781
      %837 = vmatmul.bf16.gmra.mxu0 %v661
      %v838 = vpop.f32.mrf.mxu0
      %v839 = vadd.f32 0.0, %v838
      %v840 = vpop.f32.mrf.mxu0
      %v841 = vadd.f32 0.0, %v840
      %842 = vmatmul.bf16.gmra.mxu0 %v664
      %v843 = vpop.f32.mrf.mxu0
      %v844 = vadd.f32 0.0, %v843
      %v845 = vpop.f32.mrf.mxu0
      %v846 = vadd.f32 0.0, %v845
      %847 = vmatmul.bf16.gmra.mxu0 %v667
      %v848 = vpop.f32.mrf.mxu0
      %v849 = vadd.f32 0.0, %v848
      %v850 = vpop.f32.mrf.mxu0
      %v851 = vadd.f32 0.0, %v850
      %852 = vmatmul.bf16.gmra.mxu0 %v670
      %v853 = vpop.f32.mrf.mxu0
      %v854 = vadd.f32 0.0, %v853
      %v855 = vpop.f32.mrf.mxu0
      %v856 = vadd.f32 0.0, %v855
      %857 = vdwg.mxu0
      %858 = vmatpush.bf16.msra.mxu0 %v796
      %859 = vmatpush.bf16.msra.mxu0 %v795
      %860 = vmatpush.bf16.msra.mxu0 %v794
      %861 = vmatpush.bf16.msra.mxu0 %v793
      %862 = vmatpush.bf16.msra.mxu0 %v792
      %863 = vmatpush.bf16.msra.mxu0 %v791
      %864 = vmatpush.bf16.msra.mxu0 %v790
      %865 = vmatpush.bf16.msra.mxu0 %v789
      %866 = vmatmul.bf16.gmra.mxu0 %v662
      %v867 = vpop.f32.mrf.mxu0
      %v868 = vadd.f32 %v839, %v867
      %v869 = vpop.f32.mrf.mxu0
      %v870 = vadd.f32 %v841, %v869
      %871 = vmatmul.bf16.gmra.mxu0 %v665
      %v872 = vpop.f32.mrf.mxu0
      %v873 = vadd.f32 %v844, %v872
      %v874 = vpop.f32.mrf.mxu0
      %v875 = vadd.f32 %v846, %v874
      %876 = vmatmul.bf16.gmra.mxu0 %v668
      %v877 = vpop.f32.mrf.mxu0
      %v878 = vadd.f32 %v849, %v877
      %v879 = vpop.f32.mrf.mxu0
      %v880 = vadd.f32 %v851, %v879
      %881 = vmatmul.bf16.gmra.mxu0 %v671
      %v882 = vpop.f32.mrf.mxu0
      %v883 = vadd.f32 %v854, %v882
      %v884 = vpop.f32.mrf.mxu0
      %v885 = vadd.f32 %v856, %v884
      %886 = vdwg.mxu0
      %887 = vmatpush.bf16.msra.mxu0 %v804
      %888 = vmatpush.bf16.msra.mxu0 %v803
      %889 = vmatpush.bf16.msra.mxu0 %v802
      %890 = vmatpush.bf16.msra.mxu0 %v801
      %891 = vmatpush.bf16.msra.mxu0 %v800
      %892 = vmatpush.bf16.msra.mxu0 %v799
      %893 = vmatpush.bf16.msra.mxu0 %v798
      %894 = vmatpush.bf16.msra.mxu0 %v797
      %895 = vmatmul.bf16.gmra.mxu0 %v663
      %v896 = vpop.f32.mrf.mxu0
      %v897 = vadd.f32 %v868, %v896
      %v898 = vpop.f32.mrf.mxu0
      %v899 = vadd.f32 %v870, %v898
      %900 = vmatmul.bf16.gmra.mxu0 %v666
      %v901 = vpop.f32.mrf.mxu0
      %v902 = vadd.f32 %v873, %v901
      %v903 = vpop.f32.mrf.mxu0
      %v904 = vadd.f32 %v875, %v903
      %905 = vmatmul.bf16.gmra.mxu0 %v669
      %v906 = vpop.f32.mrf.mxu0
      %v907 = vadd.f32 %v878, %v906
      %v908 = vpop.f32.mrf.mxu0
      %v909 = vadd.f32 %v880, %v908
      %910 = vmatmul.bf16.gmra.mxu0 %v672
      %v911 = vpop.f32.mrf.mxu0
      %v912 = vadd.f32 %v883, %v911
      %v913 = vpop.f32.mrf.mxu0
      %v914 = vadd.f32 %v885, %v913
      %915 = vdwg.mxu0
      %v916 = vpack.c.b16 %v447, %v445
      %v917 = vpack.c.b16 %v535, %v533
      %v918 = vpack.c.b16 %v536, %v534
      %v919 = vpack.c.b16 %v451, %v449
      %v920 = vpack.c.b16 %v539, %v537
      %v921 = vpack.c.b16 %v540, %v538
      %v922 = vpack.c.b16 %v455, %v453
      %v923 = vpack.c.b16 %v543, %v541
      %v924 = vpack.c.b16 %v544, %v542
      %v925 = vpack.c.b16 %v459, %v457
      %v926 = vpack.c.b16 %v547, %v545
      %v927 = vpack.c.b16 %v548, %v546
      %v988 = vunpack.c.l.b16 %v549
      %v989 = vunpack.c.l.b16 %v550
      %v990 = vunpack.c.l.b16 %v551
      %v991 = vunpack.c.l.b16 %v552
      %v992 = vunpack.c.l.b16 %v553
      %v993 = vunpack.c.l.b16 %v554
      %v994 = vunpack.c.l.b16 %v555
      %v995 = vunpack.c.l.b16 %v556
      %v996 = vunpack.c.l.b16 %v557
      %v997 = vunpack.c.l.b16 %v558
      %v998 = vunpack.c.l.b16 %v559
      %v999 = vunpack.c.l.b16 %v560
      %v1000 = vunpack.c.l.b16 %v561
      %v1001 = vunpack.c.l.b16 %v562
      %v1002 = vunpack.c.l.b16 %v563
      %v1003 = vunpack.c.l.b16 %v564
      %v1004 = vunpack.c.l.b16 %v565
      %v1005 = vunpack.c.l.b16 %v566
      %v1006 = vunpack.c.l.b16 %v567
      %v1007 = vunpack.c.l.b16 %v568
      %v1008 = vunpack.c.l.b16 %v569
      %v1009 = vunpack.c.l.b16 %v570
      %v1010 = vunpack.c.l.b16 %v571
      %v1011 = vunpack.c.l.b16 %v572
      %v1012 = vunpack.c.l.b16 %v573
      %v1013 = vunpack.c.l.b16 %v574
      %v1014 = vunpack.c.l.b16 %v575
      %v1015 = vunpack.c.l.b16 %v576
      %v1016 = vunpack.c.l.b16 %v577
      %v1017 = vunpack.c.l.b16 %v578
      %v1018 = vunpack.c.l.b16 %v579
      %v1019 = vunpack.c.l.b16 %v580
      %v1020 = vunpack.c.l.b16 %v581
      %v1021 = vunpack.c.l.b16 %v582
      %v1022 = vunpack.c.l.b16 %v583
      %v1023 = vunpack.c.l.b16 %v584
      %v1024 = vunpack.c.l.b16 %v585
      %v1025 = vunpack.c.l.b16 %v586
      %v1026 = vunpack.c.l.b16 %v587
      %v1027 = vunpack.c.l.b16 %v588
      %v1028 = vunpack.c.l.b16 %v589
      %v1029 = vunpack.c.l.b16 %v590
      %v1030 = vunpack.c.l.b16 %v591
      %v1031 = vunpack.c.l.b16 %v592
      %v1032 = vunpack.c.l.b16 %v593
      %v1033 = vunpack.c.l.b16 %v594
      %v1034 = vunpack.c.l.b16 %v595
      %v1035 = vunpack.c.l.b16 %v596
      %v1036 = vpack.c.b16 %v989, %v988
      %v1037 = vpack.c.b16 %v991, %v990
      %v1038 = vpack.c.b16 %v993, %v992
      %v1039 = vpack.c.b16 %v995, %v994
      %v1040 = vpack.c.b16 %v997, %v996
      %v1041 = vpack.c.b16 %v999, %v998
      %v1042 = vpack.c.b16 %v1001, %v1000
      %v1043 = vpack.c.b16 %v1003, %v1002
      %v1044 = vpack.c.b16 %v1005, %v1004
      %v1045 = vpack.c.b16 %v1007, %v1006
      %v1046 = vpack.c.b16 %v1009, %v1008
      %v1047 = vpack.c.b16 %v1011, %v1010
      %v1048 = vpack.c.b16 %v1013, %v1012
      %v1049 = vpack.c.b16 %v1015, %v1014
      %v1050 = vpack.c.b16 %v1017, %v1016
      %v1051 = vpack.c.b16 %v1019, %v1018
      %v1052 = vpack.c.b16 %v1021, %v1020
      %v1053 = vpack.c.b16 %v1023, %v1022
      %v1054 = vpack.c.b16 %v1025, %v1024
      %v1055 = vpack.c.b16 %v1027, %v1026
      %v1056 = vpack.c.b16 %v1029, %v1028
      %v1057 = vpack.c.b16 %v1031, %v1030
      %v1058 = vpack.c.b16 %v1033, %v1032
      %v1059 = vpack.c.b16 %v1035, %v1034
      %1084 = vmatpush.bf16.msra.mxu0 %v1043
      %1085 = vmatpush.bf16.msra.mxu0 %v1042
      %1086 = vmatpush.bf16.msra.mxu0 %v1041
      %1087 = vmatpush.bf16.msra.mxu0 %v1040
      %1088 = vmatpush.bf16.msra.mxu0 %v1039
      %1089 = vmatpush.bf16.msra.mxu0 %v1038
      %1090 = vmatpush.bf16.msra.mxu0 %v1037
      %1091 = vmatpush.bf16.msra.mxu0 %v1036
      %1092 = vmatmul.bf16.gmra.mxu0 %v916
      %v1093 = vpop.f32.mrf.mxu0
      %v1094 = vadd.f32 %v897, %v1093
      %v1095 = vpop.f32.mrf.mxu0
      %v1096 = vadd.f32 %v899, %v1095
      %1097 = vmatmul.bf16.gmra.mxu0 %v919
      %v1098 = vpop.f32.mrf.mxu0
      %v1099 = vadd.f32 %v902, %v1098
      %v1100 = vpop.f32.mrf.mxu0
      %v1101 = vadd.f32 %v904, %v1100
      %1102 = vmatmul.bf16.gmra.mxu0 %v922
      %v1103 = vpop.f32.mrf.mxu0
      %v1104 = vadd.f32 %v907, %v1103
      %v1105 = vpop.f32.mrf.mxu0
      %v1106 = vadd.f32 %v909, %v1105
      %1107 = vmatmul.bf16.gmra.mxu0 %v925
      %v1108 = vpop.f32.mrf.mxu0
      %v1109 = vadd.f32 %v912, %v1108
      %v1110 = vpop.f32.mrf.mxu0
      %v1111 = vadd.f32 %v914, %v1110
      %1112 = vdwg.mxu0
      %1113 = vmatpush.bf16.msra.mxu0 %v1051
      %1114 = vmatpush.bf16.msra.mxu0 %v1050
      %1115 = vmatpush.bf16.msra.mxu0 %v1049
      %1116 = vmatpush.bf16.msra.mxu0 %v1048
      %1117 = vmatpush.bf16.msra.mxu0 %v1047
      %1118 = vmatpush.bf16.msra.mxu0 %v1046
      %1119 = vmatpush.bf16.msra.mxu0 %v1045
      %1120 = vmatpush.bf16.msra.mxu0 %v1044
      %1121 = vmatmul.bf16.gmra.mxu0 %v917
      %v1122 = vpop.f32.mrf.mxu0
      %v1123 = vadd.f32 %v1094, %v1122
      %v1124 = vpop.f32.mrf.mxu0
      %v1125 = vadd.f32 %v1096, %v1124
      %1126 = vmatmul.bf16.gmra.mxu0 %v920
      %v1127 = vpop.f32.mrf.mxu0
      %v1128 = vadd.f32 %v1099, %v1127
      %v1129 = vpop.f32.mrf.mxu0
      %v1130 = vadd.f32 %v1101, %v1129
      %1131 = vmatmul.bf16.gmra.mxu0 %v923
      %v1132 = vpop.f32.mrf.mxu0
      %v1133 = vadd.f32 %v1104, %v1132
      %v1134 = vpop.f32.mrf.mxu0
      %v1135 = vadd.f32 %v1106, %v1134
      %1136 = vmatmul.bf16.gmra.mxu0 %v926
      %v1137 = vpop.f32.mrf.mxu0
      %v1138 = vadd.f32 %v1109, %v1137
      %v1139 = vpop.f32.mrf.mxu0
      %v1140 = vadd.f32 %v1111, %v1139
      %1141 = vdwg.mxu0
      %1142 = vmatpush.bf16.msra.mxu0 %v1059
      %1143 = vmatpush.bf16.msra.mxu0 %v1058
      %1144 = vmatpush.bf16.msra.mxu0 %v1057
      %1145 = vmatpush.bf16.msra.mxu0 %v1056
      %1146 = vmatpush.bf16.msra.mxu0 %v1055
      %1147 = vmatpush.bf16.msra.mxu0 %v1054
      %1148 = vmatpush.bf16.msra.mxu0 %v1053
      %1149 = vmatpush.bf16.msra.mxu0 %v1052
      %1150 = vmatmul.bf16.gmra.mxu0 %v918
      %v1151 = vpop.f32.mrf.mxu0
      %v1152 = vadd.f32 %v1123, %v1151
      %v1153 = vpop.f32.mrf.mxu0
      %v1154 = vadd.f32 %v1125, %v1153
      %1155 = vmatmul.bf16.gmra.mxu0 %v921
      %v1156 = vpop.f32.mrf.mxu0
      %v1157 = vadd.f32 %v1128, %v1156
      %v1158 = vpop.f32.mrf.mxu0
      %v1159 = vadd.f32 %v1130, %v1158
      %1160 = vmatmul.bf16.gmra.mxu0 %v924
      %v1161 = vpop.f32.mrf.mxu0
      %v1162 = vadd.f32 %v1133, %v1161
      %v1163 = vpop.f32.mrf.mxu0
      %v1164 = vadd.f32 %v1135, %v1163
      %1165 = vmatmul.bf16.gmra.mxu0 %v927
      %v1166 = vpop.f32.mrf.mxu0
      %v1167 = vadd.f32 %v1138, %v1166
      %v1168 = vpop.f32.mrf.mxu0
      %v1169 = vadd.f32 %v1140, %v1168
      %1170 = vdwg.mxu0
      %v1173 = vunpack.c.l.b16 %v427
      %v1174 = vunpack.c.l.b16 %v428
      %v1175 = vpack.c.b16 %v1174, %v1173
      %v1177 = vshrl.u32 %v1175, 16
      %v1179 = vshll.u32 %v1175, 16
      %v1181 = vrot.slane %v1179, 1
      %v1182 = vor.u32 %v1177, %v1181
      %v1183 = vrot.slane %v1175, 1
      %v1184 = vunpack.c.l.b16 %v1182
      %v1185 = vunpack.c.l.b16 %v1183
      %s1186 = scalar_lea.vmem %s3, 384
      %v1187 = vld [vmem:[%s1186] sm:$0xf]
      %v1188 = vld [vmem:[%s1186 + $0x4] sm:$0xf]
      %v1189 = vld [vmem:[%s1186 + $0x8] sm:$0xf]
      %v1190 = vld [vmem:[%s1186 + $0xc] sm:$0xf]
      %v1191 = vld [vmem:[%s1186 + $0x10] sm:$0xf]
      %v1192 = vld [vmem:[%s1186 + $0x14] sm:$0xf]
      %v1193 = vld [vmem:[%s1186 + $0x18] sm:$0xf]
      %v1194 = vld [vmem:[%s1186 + $0x1c] sm:$0xf]
      %v1195 = vld [vmem:[%s1186 + $0x20] sm:$0xf]
      %v1196 = vld [vmem:[%s1186 + $0x24] sm:$0xf]
      %v1197 = vld [vmem:[%s1186 + $0x28] sm:$0xf]
      %v1198 = vld [vmem:[%s1186 + $0x2c] sm:$0xf]
      %v1199 = vld [vmem:[%s1186 + $0x30] sm:$0xf]
      %v1200 = vld [vmem:[%s1186 + $0x34] sm:$0xf]
      %v1201 = vld [vmem:[%s1186 + $0x38] sm:$0xf]
      %v1202 = vld [vmem:[%s1186 + $0x3c] sm:$0xf]
      %v1203 = vld [vmem:[%s1186 + $0x40] sm:$0xf]
      %v1204 = vld [vmem:[%s1186 + $0x44] sm:$0xf]
      %v1205 = vld [vmem:[%s1186 + $0x48] sm:$0xf]
      %v1206 = vld [vmem:[%s1186 + $0x4c] sm:$0xf]
      %v1207 = vld [vmem:[%s1186 + $0x50] sm:$0xf]
      %v1208 = vld [vmem:[%s1186 + $0x54] sm:$0xf]
      %v1209 = vld [vmem:[%s1186 + $0x58] sm:$0xf]
      %v1210 = vld [vmem:[%s1186 + $0x5c] sm:$0xf]
      %v1211 = vld [vmem:[%s1186 + $0x60] sm:$0xf]
      %v1212 = vld [vmem:[%s1186 + $0x64] sm:$0xf]
      %v1213 = vld [vmem:[%s1186 + $0x68] sm:$0xf]
      %v1214 = vld [vmem:[%s1186 + $0x6c] sm:$0xf]
      %v1215 = vld [vmem:[%s1186 + $0x70] sm:$0xf]
      %v1216 = vld [vmem:[%s1186 + $0x74] sm:$0xf]
      %v1217 = vld [vmem:[%s1186 + $0x78] sm:$0xf]
      %v1218 = vld [vmem:[%s1186 + $0x7c] sm:$0xf]
      %v1219 = vld [vmem:[%s1186 + $0x80] sm:$0xf]
      %v1220 = vld [vmem:[%s1186 + $0x84] sm:$0xf]
      %v1221 = vld [vmem:[%s1186 + $0x88] sm:$0xf]
      %v1222 = vld [vmem:[%s1186 + $0x8c] sm:$0xf]
      %v1223 = vld [vmem:[%s1186 + $0x90] sm:$0xf]
      %v1224 = vld [vmem:[%s1186 + $0x94] sm:$0xf]
      %v1225 = vld [vmem:[%s1186 + $0x98] sm:$0xf]
      %v1226 = vld [vmem:[%s1186 + $0x9c] sm:$0xf]
      %v1227 = vld [vmem:[%s1186 + $0xa0] sm:$0xf]
      %v1228 = vld [vmem:[%s1186 + $0xa4] sm:$0xf]
      %v1229 = vld [vmem:[%s1186 + $0xa8] sm:$0xf]
      %v1230 = vld [vmem:[%s1186 + $0xac] sm:$0xf]
      %v1231 = vld [vmem:[%s1186 + $0xb0] sm:$0xf]
      %v1232 = vld [vmem:[%s1186 + $0xb4] sm:$0xf]
      %v1233 = vld [vmem:[%s1186 + $0xb8] sm:$0xf]
      %v1234 = vld [vmem:[%s1186 + $0xbc] sm:$0xf]
      %v1235 = vpack.c.b16 %v1173, %v599
      %v1236 = vpack.c.b16 %v1184, %v610
      %v1237 = vpack.c.b16 %v1185, %v611
      %v1289 = vunpack.c.l.b16 %v1187
      %v1290 = vunpack.c.l.b16 %v1188
      %v1291 = vunpack.c.l.b16 %v1189
      %v1292 = vunpack.c.l.b16 %v1190
      %v1293 = vunpack.c.l.b16 %v1191
      %v1294 = vunpack.c.l.b16 %v1192
      %v1295 = vunpack.c.l.b16 %v1193
      %v1296 = vunpack.c.l.b16 %v1194
      %v1297 = vunpack.c.l.b16 %v1195
      %v1298 = vunpack.c.l.b16 %v1196
      %v1299 = vunpack.c.l.b16 %v1197
      %v1300 = vunpack.c.l.b16 %v1198
      %v1301 = vunpack.c.l.b16 %v1199
      %v1302 = vunpack.c.l.b16 %v1200
      %v1303 = vunpack.c.l.b16 %v1201
      %v1304 = vunpack.c.l.b16 %v1202
      %v1305 = vunpack.c.l.b16 %v1203
      %v1306 = vunpack.c.l.b16 %v1204
      %v1307 = vunpack.c.l.b16 %v1205
      %v1308 = vunpack.c.l.b16 %v1206
      %v1309 = vunpack.c.l.b16 %v1207
      %v1310 = vunpack.c.l.b16 %v1208
      %v1311 = vunpack.c.l.b16 %v1209
      %v1312 = vunpack.c.l.b16 %v1210
      %v1313 = vunpack.c.l.b16 %v1211
      %v1314 = vunpack.c.l.b16 %v1212
      %v1315 = vunpack.c.l.b16 %v1213
      %v1316 = vunpack.c.l.b16 %v1214
      %v1317 = vunpack.c.l.b16 %v1215
      %v1318 = vunpack.c.l.b16 %v1216
      %v1319 = vunpack.c.l.b16 %v1217
      %v1320 = vunpack.c.l.b16 %v1218
      %v1321 = vunpack.c.l.b16 %v1219
      %v1322 = vunpack.c.l.b16 %v1220
      %v1323 = vunpack.c.l.b16 %v1221
      %v1324 = vunpack.c.l.b16 %v1222
      %v1325 = vunpack.c.l.b16 %v1223
      %v1326 = vunpack.c.l.b16 %v1224
      %v1327 = vunpack.c.l.b16 %v1225
      %v1328 = vunpack.c.l.b16 %v1226
      %v1329 = vunpack.c.l.b16 %v1227
      %v1330 = vunpack.c.l.b16 %v1228
      %v1331 = vunpack.c.l.b16 %v1229
      %v1332 = vunpack.c.l.b16 %v1230
      %v1333 = vunpack.c.l.b16 %v1231
      %v1334 = vunpack.c.l.b16 %v1232
      %v1335 = vunpack.c.l.b16 %v1233
      %v1336 = vunpack.c.l.b16 %v1234
      %v1337 = vpack.c.b16 %v1290, %v1289
      %v1338 = vpack.c.b16 %v1292, %v1291
      %v1339 = vpack.c.b16 %v1294, %v1293
      %v1340 = vpack.c.b16 %v1296, %v1295
      %v1341 = vpack.c.b16 %v1298, %v1297
      %v1342 = vpack.c.b16 %v1300, %v1299
      %v1343 = vpack.c.b16 %v1302, %v1301
      %v1344 = vpack.c.b16 %v1304, %v1303
      %v1345 = vpack.c.b16 %v1306, %v1305
      %v1346 = vpack.c.b16 %v1308, %v1307
      %v1347 = vpack.c.b16 %v1310, %v1309
      %v1348 = vpack.c.b16 %v1312, %v1311
      %v1349 = vpack.c.b16 %v1314, %v1313
      %v1350 = vpack.c.b16 %v1316, %v1315
      %v1351 = vpack.c.b16 %v1318, %v1317
      %v1352 = vpack.c.b16 %v1320, %v1319
      %v1353 = vpack.c.b16 %v1322, %v1321
      %v1354 = vpack.c.b16 %v1324, %v1323
      %v1355 = vpack.c.b16 %v1326, %v1325
      %v1356 = vpack.c.b16 %v1328, %v1327
      %v1357 = vpack.c.b16 %v1330, %v1329
      %v1358 = vpack.c.b16 %v1332, %v1331
      %v1359 = vpack.c.b16 %v1334, %v1333
      %v1360 = vpack.c.b16 %v1336, %v1335
      %1385 = vmatpush.bf16.msra.mxu0 %v1344
      %1386 = vmatpush.bf16.msra.mxu0 %v1343
      %1387 = vmatpush.bf16.msra.mxu0 %v1342
      %1388 = vmatpush.bf16.msra.mxu0 %v1341
      %1389 = vmatpush.bf16.msra.mxu0 %v1340
      %1390 = vmatpush.bf16.msra.mxu0 %v1339
      %1391 = vmatpush.bf16.msra.mxu0 %v1338
      %1392 = vmatpush.bf16.msra.mxu0 %v1337
      %1393 = vmatmul.bf16.gmra.mxu0 %v919
      %v1394 = vpop.f32.mrf.mxu0
      %v1395 = vadd.f32 0.0, %v1394
      %v1396 = vpop.f32.mrf.mxu0
      %v1397 = vadd.f32 0.0, %v1396
      %1398 = vmatmul.bf16.gmra.mxu0 %v922
      %v1399 = vpop.f32.mrf.mxu0
      %v1400 = vadd.f32 0.0, %v1399
      %v1401 = vpop.f32.mrf.mxu0
      %v1402 = vadd.f32 0.0, %v1401
      %1403 = vmatmul.bf16.gmra.mxu0 %v925
      %v1404 = vpop.f32.mrf.mxu0
      %v1405 = vadd.f32 0.0, %v1404
      %v1406 = vpop.f32.mrf.mxu0
      %v1407 = vadd.f32 0.0, %v1406
      %1408 = vmatmul.bf16.gmra.mxu0 %v1235
      %v1409 = vpop.f32.mrf.mxu0
      %v1410 = vadd.f32 0.0, %v1409
      %v1411 = vpop.f32.mrf.mxu0
      %v1412 = vadd.f32 0.0, %v1411
      %1413 = vdwg.mxu0
      %1414 = vmatpush.bf16.msra.mxu0 %v1352
      %1415 = vmatpush.bf16.msra.mxu0 %v1351
      %1416 = vmatpush.bf16.msra.mxu0 %v1350
      %1417 = vmatpush.bf16.msra.mxu0 %v1349
      %1418 = vmatpush.bf16.msra.mxu0 %v1348
      %1419 = vmatpush.bf16.msra.mxu0 %v1347
      %1420 = vmatpush.bf16.msra.mxu0 %v1346
      %1421 = vmatpush.bf16.msra.mxu0 %v1345
      %1422 = vmatmul.bf16.gmra.mxu0 %v920
      %v1423 = vpop.f32.mrf.mxu0
      %v1424 = vadd.f32 %v1395, %v1423
      %v1425 = vpop.f32.mrf.mxu0
      %v1426 = vadd.f32 %v1397, %v1425
      %1427 = vmatmul.bf16.gmra.mxu0 %v923
      %v1428 = vpop.f32.mrf.mxu0
      %v1429 = vadd.f32 %v1400, %v1428
      %v1430 = vpop.f32.mrf.mxu0
      %v1431 = vadd.f32 %v1402, %v1430
      %1432 = vmatmul.bf16.gmra.mxu0 %v926
      %v1433 = vpop.f32.mrf.mxu0
      %v1434 = vadd.f32 %v1405, %v1433
      %v1435 = vpop.f32.mrf.mxu0
      %v1436 = vadd.f32 %v1407, %v1435
      %1437 = vmatmul.bf16.gmra.mxu0 %v1236
      %v1438 = vpop.f32.mrf.mxu0
      %v1439 = vadd.f32 %v1410, %v1438
      %v1440 = vpop.f32.mrf.mxu0
      %v1441 = vadd.f32 %v1412, %v1440
      %1442 = vdwg.mxu0
      %1443 = vmatpush.bf16.msra.mxu0 %v1360
      %1444 = vmatpush.bf16.msra.mxu0 %v1359
      %1445 = vmatpush.bf16.msra.mxu0 %v1358
      %1446 = vmatpush.bf16.msra.mxu0 %v1357
      %1447 = vmatpush.bf16.msra.mxu0 %v1356
      %1448 = vmatpush.bf16.msra.mxu0 %v1355
      %1449 = vmatpush.bf16.msra.mxu0 %v1354
      %1450 = vmatpush.bf16.msra.mxu0 %v1353
      %1451 = vmatmul.bf16.gmra.mxu0 %v921
      %v1452 = vpop.f32.mrf.mxu0
      %v1453 = vadd.f32 %v1424, %v1452
      %v1454 = vpop.f32.mrf.mxu0
      %v1455 = vadd.f32 %v1426, %v1454
      %1456 = vmatmul.bf16.gmra.mxu0 %v924
      %v1457 = vpop.f32.mrf.mxu0
      %v1458 = vadd.f32 %v1429, %v1457
      %v1459 = vpop.f32.mrf.mxu0
      %v1460 = vadd.f32 %v1431, %v1459
      %1461 = vmatmul.bf16.gmra.mxu0 %v927
      %v1462 = vpop.f32.mrf.mxu0
      %v1463 = vadd.f32 %v1434, %v1462
      %v1464 = vpop.f32.mrf.mxu0
      %v1465 = vadd.f32 %v1436, %v1464
      %1466 = vmatmul.bf16.gmra.mxu0 %v1237
      %v1467 = vpop.f32.mrf.mxu0
      %v1468 = vadd.f32 %v1439, %v1467
      %v1469 = vpop.f32.mrf.mxu0
      %v1470 = vadd.f32 %v1441, %v1469
      %1471 = vdwg.mxu0
      %v1472 = vadd.f32 %v1152, %v1453
      %v1473 = vadd.f32 %v1154, %v1455
      %v1474 = vadd.f32 %v1157, %v1458
      %v1475 = vadd.f32 %v1159, %v1460
      %v1476 = vadd.f32 %v1162, %v1463
      %v1477 = vadd.f32 %v1164, %v1465
      %v1478 = vadd.f32 %v1167, %v1468
      %v1479 = vadd.f32 %v1169, %v1470
      %v1480 = vld [vmem:[%s2] sm:$0x1]
      %v1481 = vperm.slane %v1480, 0
      %v1482 = vmul.f32 %v1472, %v1481
      %v1483 = vmul.f32 %v1473, %v1481
      %v1484 = vmul.f32 %v1474, %v1481
      %v1485 = vmul.f32 %v1475, %v1481
      %v1486 = vmul.f32 %v1476, %v1481
      %v1487 = vmul.f32 %v1477, %v1481
      %v1488 = vmul.f32 %v1478, %v1481
      %v1489 = vmul.f32 %v1479, %v1481
      %v1490 = vld [vmem:[%s2 + $0x1] sm:$0x1]
      %v1491 = vperm.slane %v1490, 0
      %v1492 = vadd.f32 %v1482, %v1491
      %v1493 = vadd.f32 %v1483, %v1491
      %v1494 = vadd.f32 %v1484, %v1491
      %v1495 = vadd.f32 %v1485, %v1491
      %v1496 = vadd.f32 %v1486, %v1491
      %v1497 = vadd.f32 %v1487, %v1491
      %v1498 = vadd.f32 %v1488, %v1491
      %v1499 = vadd.f32 %v1489, %v1491
      %v1500 = vmax.f32 %v1492, 0.0
      %v1501 = vmax.f32 %v1493, 0.0
      %v1502 = vmax.f32 %v1494, 0.0
      %v1503 = vmax.f32 %v1495, 0.0
      %v1504 = vmax.f32 %v1496, 0.0
      %v1505 = vmax.f32 %v1497, 0.0
      %v1506 = vmax.f32 %v1498, 0.0
      %v1507 = vmax.f32 %v1499, 0.0
      %v1508 = vpack.c.bf16 %v1501, %v1500
      %v1509 = vpack.c.bf16 %v1503, %v1502
      %v1510 = vpack.c.bf16 %v1505, %v1504
      %v1511 = vpack.c.bf16 %v1507, %v1506
      %v1512 = vld [vmem:[%s4] sm:$0xf]
      %v1513 = vld [vmem:[%s4 + $0x4] sm:$0xf]
      %v1514 = vld [vmem:[%s4 + $0x8] sm:$0xf]
      %v1515 = vld [vmem:[%s4 + $0xc] sm:$0xf]
      %v1520 = vunpack.c.l.b16 %v1512
      %v1521 = vunpack.c.l.b16 %v1513
      %v1522 = vunpack.c.l.b16 %v1514
      %v1523 = vunpack.c.l.b16 %v1515
      %v1524 = vpack.c.b16 %v1521, %v1520
      %v1525 = vpack.c.b16 %v1523, %v1522
      %vm1528 = vcmask 261120
      %v1530 = vsel %vm1528, %v1508, 0
      %v1533 = vsel %vm1528, %v1509, 0
      %v1536 = vsel %vm1528, %v1510, 0
      %v1539 = vsel %vm1528, %v1511, 0
      %1541 = vmatpush.bf16.msra.mxu0 0
      %1542 = vmatpush.bf16.msra.mxu0 0
      %1543 = vmatpush.bf16.msra.mxu0 0
      %1544 = vmatpush.bf16.msra.mxu0 0
      %1545 = vmatpush.bf16.msra.mxu0 0
      %1546 = vmatpush.bf16.msra.mxu0 0
      %1547 = vmatpush.bf16.msra.mxu0 %v1525
      %1548 = vmatpush.bf16.msra.mxu0 %v1524
      %1549 = vmatmul.bf16.gmra.mxu0 %v1530
      %v1550 = vpop.f32.mrf.mxu0
      %v1551 = vadd.f32 0.0, %v1550
      %v1552 = vpop.f32.mrf.mxu0
      %v1553 = vadd.f32 0.0, %v1552
      %1554 = vmatmul.bf16.gmra.mxu0 %v1533
      %v1555 = vpop.f32.mrf.mxu0
      %v1556 = vadd.f32 0.0, %v1555
      %v1557 = vpop.f32.mrf.mxu0
      %v1558 = vadd.f32 0.0, %v1557
      %1559 = vmatmul.bf16.gmra.mxu0 %v1536
      %v1560 = vpop.f32.mrf.mxu0
      %v1561 = vadd.f32 0.0, %v1560
      %v1562 = vpop.f32.mrf.mxu0
      %v1563 = vadd.f32 0.0, %v1562
      %1564 = vmatmul.bf16.gmra.mxu0 %v1539
      %v1565 = vpop.f32.mrf.mxu0
      %v1566 = vadd.f32 0.0, %v1565
      %v1567 = vpop.f32.mrf.mxu0
      %v1568 = vadd.f32 0.0, %v1567
      %1569 = vdwg.mxu0
      %v1570 = vld [vmem:[%s239] sm:$0xf]
      %v1571 = vld [vmem:[%s239 + $0x4] sm:$0xf]
      %v1572 = vld [vmem:[%s239 + $0x8] sm:$0xf]
      %v1573 = vld [vmem:[%s239 + $0xc] sm:$0xf]
      %v1574 = vld [vmem:[%s239 + $0x10] sm:$0xf]
      %v1575 = vld [vmem:[%s239 + $0x14] sm:$0xf]
      %v1576 = vld [vmem:[%s239 + $0x18] sm:$0xf]
      %v1577 = vld [vmem:[%s239 + $0x1c] sm:$0xf]
      %v1578 = vunpack.c.l.bf16 %v1570
      %v1579 = vunpack.c.l.bf16 %v1571
      %v1580 = vunpack.c.l.bf16 %v1572
      %v1581 = vunpack.c.l.bf16 %v1573
      %v1582 = vunpack.c.l.bf16 %v1574
      %v1583 = vunpack.c.l.bf16 %v1575
      %v1584 = vunpack.c.l.bf16 %v1576
      %v1585 = vunpack.c.l.bf16 %v1577
      %v1586 = vadd.f32 %v1578, %v1551
      %v1587 = vadd.f32 %v1579, %v1553
      %v1588 = vadd.f32 %v1580, %v1556
      %v1589 = vadd.f32 %v1581, %v1558
      %v1590 = vadd.f32 %v1582, %v1561
      %v1591 = vadd.f32 %v1583, %v1563
      %v1592 = vadd.f32 %v1584, %v1566
      %v1593 = vadd.f32 %v1585, %v1568
      %1594 = vst [vmem:[%s244] sm:$0xff] %v1586
      %1595 = vst [vmem:[%s244 + $0x8] sm:$0xff] %v1587
      %1596 = vst [vmem:[%s244 + $0x10] sm:$0xff] %v1588
      %1597 = vst [vmem:[%s244 + $0x18] sm:$0xff] %v1589
      %1598 = vst [vmem:[%s244 + $0x20] sm:$0xff] %v1590
      %1599 = vst [vmem:[%s244 + $0x28] sm:$0xff] %v1591
      %1600 = vst [vmem:[%s244 + $0x30] sm:$0xff] %v1592
      %1601 = vst [vmem:[%s244 + $0x38] sm:$0xff] %v1593
      %p1602 = scmp.lt.s32.totalorder %s16, 1
      %s1603 = scalar_select %p1602, %s16, 1
      %s1604 = smul.addr %s1603, 8
      %s1605 = smul.addr %s1604, 8
      %s1606 = scalar_lea.vmem %s5, %s1605
      // Predicated region
      $region41: #{dual_path_block.3} parent=39 // pred_check
        %p1607 = pneg %p149
      $region42: #{dual_path_block.3} parent=39 // pred_check_branch
        %1609 = sbr.rel (%p1607) target = $region44
      $region43: #{dual_path_block.3} parent=39 // pred_region
        _
      $region44: #{dual_path_block.3} parent=39 // pred_fallthru
        _
    $region40: #{dual_path_block.3} parent=5 // pred_fallthru
      _
    %p1610 = scmp.le.s32.totalorder 2, %s11
    // Predicated region
    $region45: #{dual_path_block.3} parent=5 // pred_check
      %p1611 = pneg %p1610
    $region46: #{dual_path_block.3} parent=5 // pred_check_branch
      %1613 = sbr.rel (%p1611) target = $region48
    $region47: #{dual_path_block.3} parent=5 // pred_region
      %s1614 = ssub.s32 %s11, 2
      // Predicated region
      $region49: #{dual_path_block.3} parent=47 // pred_check
        %p1615 = pneg %p155
      $region50: #{dual_path_block.3} parent=47 // pred_check_branch
        %1617 = sbr.rel (%p1615) target = $region52
      $region51: #{dual_path_block.3} parent=47 // pred_region
        %p1618 = scmp.lt.s32.totalorder %s17, 1
        %s1619 = scalar_select %p1618, %s17, 1
        %s1620 = smul.addr %s1619, 8
        %s1621 = smul.addr %s1620, 8
        %s1622 = scalar_lea.vmem %s5, %s1621
      $region52: #{dual_path_block.3} parent=47 // pred_fallthru
        _
    $region48: #{dual_path_block.3} parent=5 // pred_fallthru
      _
  $region6: #{dual_path_block.3} parent=0 // loop_footer
    %s15 = sadd.s32 1, %s11
  $region7: #{dual_path_block.3} parent=0 // loop_footer_branch
    %10 = sbr.rel target = $region3
  $region8: #{dual_path_block.3} parent=0 // loop_exit
    _

</llo_original>
